<compile_context>
chip_gen: v6e
topology: v6e:2x2x1
jax: 0.10.0
libtpu: 0.0.40
codegen_flags: <defaults>
</compile_context>

<pallas_src>
import functools

import jax
import jax.numpy as jnp
import numpy as np
from jax.experimental import pallas as pl
from jax.experimental.pallas import tpu as pltpu


def _scgp_scale_dot_kernel(x_ref, wq_ref, wv_ref, wo_ref, bo_ref, mask_ref, o_ref,
                           *, num_heads, batch, seq, scale):
    # x_ref:    (B*L, D)        flattened activations
    # wq_ref:   (H, D, VD)      per-head column blocks of Wq^T
    # wv_ref:   (H, D, VD)      per-head column blocks of Wv^T
    # wo_ref:   (H, VD, D)      per-head row blocks of Wo^T
    # bo_ref:   (1, D)
    # mask_ref: (B*L, B*L)      block-diagonal 0/1 mask (same-batch pairs)
    # o_ref:    (B*L, D)
    BL = batch * seq
    D = x_ref.shape[1]

    x = x_ref[...]                                                     # (BL, D)
    xb = jnp.broadcast_to(x[None], (num_heads, BL, D))                 # (H, BL, D), hoisted once

    # Head-batched projections: one batched dot_general each (batch dim = H).
    q = jnp.einsum('hmd,hdn->hmn', xb, wq_ref[...],
                   preferred_element_type=jnp.float32)                 # (H, BL, VD)
    v = jnp.einsum('hmd,hdn->hmn', xb, wv_ref[...],
                   preferred_element_type=jnp.float32)                 # (H, BL, VD)

    # Scores with batch folded into the M/N dims (contains cross-batch junk entries,
    # which are masked out after the softmax).  k = q in this branch of the module.
    s = scale * jnp.einsum('hmd,hnd->hmn', q, q,
                           preferred_element_type=jnp.float32)         # (H, BL, BL)

    # Softmax over the HEAD axis (dim=1 of the (B, H, L, L) tensor in PyTorch).
    # Head axis is the leading (major) dim here, so the reduction is cheap VPU work.
    m = jnp.max(s, axis=0, keepdims=True)                              # (1, BL, BL)
    e = jnp.exp(s - m)
    denom = jnp.sum(e, axis=0, keepdims=True)                          # (1, BL, BL), >= 1
    p = e * pl.reciprocal(denom, approx=True)                          # (H, BL, BL)

    # Zero out cross-batch (i, j) pairs (exact: p has no inf/nan after max-subtraction).
    p = p * mask_ref[...]                                              # (H, BL, BL)

    # out_h = p_h @ v_h  (head-batched).
    o = jnp.einsum('hmn,hnd->hmd', p, v,
                   preferred_element_type=jnp.float32)                 # (H, BL, VD)

    # W_O applied per head-chunk and summed over heads == concat-over-heads @ Wo^T.
    y = jnp.einsum('hmd,hdn->hmn', o, wo_ref[...],
                   preferred_element_type=jnp.float32)                 # (H, BL, D)
    y = jnp.sum(y, axis=0) + bo_ref[...]                               # (BL, D)

    o_ref[...] = y.astype(o_ref.dtype)


def scgp_layer_scale_dot(x, wq_t, wv_t, wo_t, bo, *, num_heads):
    """x: (B, L, D) float32. Weights pre-transposed so y = x @ W_t. Returns (B, 1, L, D)."""
    B, L, D = x.shape
    vdim = D // num_heads
    scale = 1.0 / (D ** 0.5)
    BL = B * L

    # Wrapper-side (XLA) layout plumbing -- free relative to kernel-internal relayouts.
    x_flat = x.reshape(BL, D)
    wq_h = wq_t.reshape(D, num_heads, vdim).transpose(1, 0, 2)   # (H, D, VD)
    wv_h = wv_t.reshape(D, num_heads, vdim).transpose(1, 0, 2)   # (H, D, VD)
    wo_h = wo_t.reshape(num_heads, vdim, D)                      # (H, VD, D)
    batch_ids = jnp.arange(BL, dtype=jnp.int32) // L
    mask = (batch_ids[:, None] == batch_ids[None, :]).astype(x.dtype)   # (BL, BL)

    kernel = functools.partial(_scgp_scale_dot_kernel,
                               num_heads=num_heads, batch=B, seq=L, scale=scale)

    y = pl.pallas_call(
        kernel,
        out_shape=jax.ShapeDtypeStruct((BL, D), x.dtype),
        grid=(1,),
        in_specs=[
            pl.BlockSpec((BL, D), lambda i: (0, 0)),                    # x (flattened)
            pl.BlockSpec((num_heads, D, vdim), lambda i: (0, 0, 0)),    # Wq^T per head
            pl.BlockSpec((num_heads, D, vdim), lambda i: (0, 0, 0)),    # Wv^T per head
            pl.BlockSpec((num_heads, vdim, D), lambda i: (0, 0, 0)),    # Wo^T per head
            pl.BlockSpec((1, D), lambda i: (0, 0)),                     # bo
            pl.BlockSpec((BL, BL), lambda i: (0, 0)),                   # block-diag mask
        ],
        out_specs=pl.BlockSpec((BL, D), lambda i: (0, 0)),
        compiler_params=pltpu.CompilerParams(
            dimension_semantics=("arbitrary",)),
    )(x_flat, wq_h, wv_h, wo_h, bo, mask)

    # samples = flatten(out.unsqueeze(2).permute(0,2,3,1,4), -2, -1) -> (B, 1, L, D)
    return y.reshape(B, 1, L, D)


def scgp_layer_scale_dot_ref(x, wq_t, wv_t, wo_t, bo, *, num_heads):
    """Pure-JAX reference mirroring the PyTorch forward (scale_dot, flag_cgp=False)."""
    B, L, D = x.shape
    vdim = D // num_heads
    scale = 1.0 / (D ** 0.5)

    q = (x @ wq_t).reshape(B, L, num_heads, vdim).transpose(0, 2, 1, 3)  # (B,H,L,VD)
    v = (x @ wv_t).reshape(B, L, num_heads, vdim).transpose(0, 2, 1, 3)
    k = q
    score = scale * jnp.einsum('bhid,bhjd->bhij', q, k)                  # (B,H,L,L)
    prob = jax.nn.softmax(score, axis=1)                                 # softmax over heads
    out = jnp.einsum('bhij,bhjd->bhid', prob, v)                         # (B,H,L,VD)
    samples = out[:, :, None, :, :].transpose(0, 2, 3, 1, 4).reshape(B, 1, L, D)
    samples = samples @ wo_t + bo[0]
    return samples


if __name__ == "__main__":
    # Small shapes consistent with the module: max_len=8 (sequence), hdim=32, num_heads=4
    B, L, D, H = 2, 8, 32, 4

    key = jax.random.PRNGKey(0)
    kx, kq, kv, kwo, kbo = jax.random.split(key, 5)

    x = jax.random.normal(kx, (B, L, D), dtype=jnp.float32)

    # Deterministic parameter init (weights stored pre-transposed: y = x @ W_t)
    wq_t = (0.05 * jax.random.normal(kq, (D, D))).astype(jnp.float32)
    wv_t = (0.05 * jax.random.normal(kv, (D, D))).astype(jnp.float32)
    wo_t = (0.05 * jax.random.normal(kwo, (D, D))).astype(jnp.float32)
    bo = (0.01 * jax.random.normal(kbo, (1, D))).astype(jnp.float32)

    out = scgp_layer_scale_dot(x, wq_t, wv_t, wo_t, bo, num_heads=H)
    out = jax.block_until_ready(out)

    ref = scgp_layer_scale_dot_ref(x, wq_t, wv_t, wo_t, bo, num_heads=H)
    ref = jax.block_until_ready(ref)

    assert out.shape == (B, 1, L, D), out.shape
    # Tolerance loosened slightly because the softmax denominator uses the hardware
    # approximate reciprocal (pl.reciprocal(approx=True)); worst-case contribution to
    # the output is O(1e-3) absolute at these magnitudes.
    np.testing.assert_allclose(np.asarray(out), np.asarray(ref), rtol=5e-2, atol=5e-3)

    print("KERNEL_OK")
</pallas_src>

<mosaic_0001>
module attributes {stable_mosaic.version = 11 : i64} {
  func.func @_scgp_scale_dot_kernel(%arg0: i32, %arg1: memref<16x32xf32, #tpu.memory_space<vmem>>, %arg2: memref<4x32x8xf32, #tpu.memory_space<vmem>>, %arg3: memref<4x32x8xf32, #tpu.memory_space<vmem>>, %arg4: memref<4x8x32xf32, #tpu.memory_space<vmem>>, %arg5: memref<1x32xf32, #tpu.memory_space<vmem>>, %arg6: memref<16x16xf32, #tpu.memory_space<vmem>>, %arg7: memref<16x32xf32, #tpu.memory_space<vmem>>) attributes {dimension_semantics = [#tpu.dimension_semantics<arbitrary>], iteration_bounds = array<i64: 1>, scalar_prefetch = 0 : i64, scratch_operands = 0 : i64, tpu.core_type = #tpu.core_type<tc>, window_params = [{pipeline_mode = #tpu.pipeline_mode<synchronous>, transform_indices = @transform_0, window_bounds = array<i64: 16, 32>}, {pipeline_mode = #tpu.pipeline_mode<synchronous>, transform_indices = @transform_1, window_bounds = array<i64: 4, 32, 8>}, {pipeline_mode = #tpu.pipeline_mode<synchronous>, transform_indices = @transform_2, window_bounds = array<i64: 4, 32, 8>}, {pipeline_mode = #tpu.pipeline_mode<synchronous>, transform_indices = @transform_3, window_bounds = array<i64: 4, 8, 32>}, {pipeline_mode = #tpu.pipeline_mode<synchronous>, transform_indices = @transform_4, window_bounds = array<i64: 1, 32>}, {pipeline_mode = #tpu.pipeline_mode<synchronous>, transform_indices = @transform_5, window_bounds = array<i64: 16, 16>}, {pipeline_mode = #tpu.pipeline_mode<synchronous>, transform_indices = @transform_6, window_bounds = array<i64: 16, 32>}]} {
    %c0 = arith.constant 0 : index
    %c0_0 = arith.constant 0 : index
    %0 = vector.load %arg1[%c0, %c0_0] : memref<16x32xf32, #tpu.memory_space<vmem>>, vector<16x32xf32>
    %1 = vector.shape_cast %0 : vector<16x32xf32> to vector<1x16x32xf32>
    %2 = vector.shape_cast %1 : vector<1x16x32xf32> to vector<1x16x32xf32>
    %3 = vector.broadcast %2 : vector<1x16x32xf32> to vector<4x16x32xf32>
    %c0_1 = arith.constant 0 : index
    %c0_2 = arith.constant 0 : index
    %c0_3 = arith.constant 0 : index
    %4 = vector.load %arg2[%c0_1, %c0_2, %c0_3] : memref<4x32x8xf32, #tpu.memory_space<vmem>>, vector<4x32x8xf32>
    "tpu.trace_start"() <{level = 10 : i32, message = "hmd,hdn->hmn"}> : () -> ()
    %cst = arith.constant dense<0.000000e+00> : vector<4x16x8xf32>
    %5 = tpu.matmul %3, %4, %cst {dimension_numbers = #tpu.dot_dimension_numbers<[2], [1], [1], [2], [0, 0, 0, 1, 1, 2], [0], [0]>} : vector<4x16x32xf32>, vector<4x32x8xf32>, vector<4x16x8xf32> -> vector<4x16x8xf32>
    "tpu.trace_stop"() : () -> ()
    %c0_4 = arith.constant 0 : index
    %c0_5 = arith.constant 0 : index
    %c0_6 = arith.constant 0 : index
    %6 = vector.load %arg3[%c0_4, %c0_5, %c0_6] : memref<4x32x8xf32, #tpu.memory_space<vmem>>, vector<4x32x8xf32>
    "tpu.trace_start"() <{level = 10 : i32, message = "hmd,hdn->hmn"}> : () -> ()
    %cst_7 = arith.constant dense<0.000000e+00> : vector<4x16x8xf32>
    %7 = tpu.matmul %3, %6, %cst_7 {dimension_numbers = #tpu.dot_dimension_numbers<[2], [1], [1], [2], [0, 0, 0, 1, 1, 2], [0], [0]>} : vector<4x16x32xf32>, vector<4x32x8xf32>, vector<4x16x8xf32> -> vector<4x16x8xf32>
    "tpu.trace_stop"() : () -> ()
    "tpu.trace_start"() <{level = 10 : i32, message = "hmd,hnd->hmn"}> : () -> ()
    %cst_8 = arith.constant dense<0.000000e+00> : vector<4x16x16xf32>
    %8 = tpu.matmul %5, %5, %cst_8 {dimension_numbers = #tpu.dot_dimension_numbers<[2], [2], [1], [1], [0, 0, 0, 1, 1, 1], [0], [0]>} : vector<4x16x8xf32>, vector<4x16x8xf32>, vector<4x16x16xf32> -> vector<4x16x16xf32>
    "tpu.trace_stop"() : () -> ()
    %cst_9 = arith.constant 0.176776692 : f32
    %9 = vector.broadcast %cst_9 : f32 to vector<4x16x16xf32>
    %10 = arith.mulf %9, %8 : vector<4x16x16xf32>
    %cst_10 = arith.constant dense<0xFF800000> : vector<16x16xf32>
    %11 = vector.multi_reduction <maximumf>, %10, %cst_10 [0] : vector<4x16x16xf32> to vector<16x16xf32>
    %12 = vector.shape_cast %11 : vector<16x16xf32> to vector<1x16x16xf32>
    %13 = vector.broadcast %12 : vector<1x16x16xf32> to vector<4x16x16xf32>
    %14 = arith.subf %10, %13 : vector<4x16x16xf32>
    %15 = math.exp %14 : vector<4x16x16xf32>
    %cst_11 = arith.constant dense<0.000000e+00> : vector<16x16xf32>
    %16 = vector.multi_reduction <add>, %15, %cst_11 [0] : vector<4x16x16xf32> to vector<16x16xf32>
    %17 = vector.shape_cast %16 : vector<16x16xf32> to vector<1x16x16xf32>
    %18 = tpu.reciprocal %17 {approx = true} : vector<1x16x16xf32> -> vector<1x16x16xf32>
    %19 = vector.broadcast %18 : vector<1x16x16xf32> to vector<4x16x16xf32>
    %20 = arith.mulf %15, %19 : vector<4x16x16xf32>
    %c0_12 = arith.constant 0 : index
    %c0_13 = arith.constant 0 : index
    %21 = vector.load %arg6[%c0_12, %c0_13] : memref<16x16xf32, #tpu.memory_space<vmem>>, vector<16x16xf32>
    %22 = vector.shape_cast %21 : vector<16x16xf32> to vector<1x16x16xf32>
    %23 = vector.broadcast %22 : vector<1x16x16xf32> to vector<4x16x16xf32>
    %24 = arith.mulf %20, %23 : vector<4x16x16xf32>
    "tpu.trace_start"() <{level = 10 : i32, message = "hmn,hnd->hmd"}> : () -> ()
    %cst_14 = arith.constant dense<0.000000e+00> : vector<4x16x8xf32>
    %25 = tpu.matmul %24, %7, %cst_14 {dimension_numbers = #tpu.dot_dimension_numbers<[2], [1], [1], [2], [0, 0, 0, 1, 1, 2], [0], [0]>} : vector<4x16x16xf32>, vector<4x16x8xf32>, vector<4x16x8xf32> -> vector<4x16x8xf32>
    "tpu.trace_stop"() : () -> ()
    %c0_15 = arith.constant 0 : index
    %c0_16 = arith.constant 0 : index
    %c0_17 = arith.constant 0 : index
    %26 = vector.load %arg4[%c0_15, %c0_16, %c0_17] : memref<4x8x32xf32, #tpu.memory_space<vmem>>, vector<4x8x32xf32>
    "tpu.trace_start"() <{level = 10 : i32, message = "hmd,hdn->hmn"}> : () -> ()
    %cst_18 = arith.constant dense<0.000000e+00> : vector<4x16x32xf32>
    %27 = tpu.matmul %25, %26, %cst_18 {dimension_numbers = #tpu.dot_dimension_numbers<[2], [1], [1], [2], [0, 0, 0, 1, 1, 2], [0], [0]>} : vector<4x16x8xf32>, vector<4x8x32xf32>, vector<4x16x32xf32> -> vector<4x16x32xf32>
    "tpu.trace_stop"() : () -> ()
    %cst_19 = arith.constant dense<0.000000e+00> : vector<16x32xf32>
    %28 = vector.multi_reduction <add>, %27, %cst_19 [0] : vector<4x16x32xf32> to vector<16x32xf32>
    %c0_20 = arith.constant 0 : index
    %c0_21 = arith.constant 0 : index
    %29 = vector.load %arg5[%c0_20, %c0_21] : memref<1x32xf32, #tpu.memory_space<vmem>>, vector<1x32xf32>
    %30 = vector.broadcast %29 : vector<1x32xf32> to vector<16x32xf32>
    %31 = arith.addf %28, %30 : vector<16x32xf32>
    %c0_22 = arith.constant 0 : index
    %c0_23 = arith.constant 0 : index
    %32 = vector.load %arg7[%c0_22, %c0_23] : memref<16x32xf32, #tpu.memory_space<vmem>>, vector<16x32xf32>
    tpu.vector_store %arg7[%c0_22, %c0_23], %31 {strides = array<i32>} : memref<16x32xf32, #tpu.memory_space<vmem>>, vector<16x32xf32>,
    return
  }
  func.func @transform_0(%arg0: i32) -> (i32, i32) {
    %c0_i32 = arith.constant 0 : i32
    %c0_i32_0 = arith.constant 0 : i32
    %c0_i32_1 = arith.constant 0 : i32
    return %c0_i32, %c0_i32_0 : i32, i32
  }
  func.func @transform_1(%arg0: i32) -> (i32, i32, i32) {
    %c0_i32 = arith.constant 0 : i32
    %c0_i32_0 = arith.constant 0 : i32
    %c0_i32_1 = arith.constant 0 : i32
    %c0_i32_2 = arith.constant 0 : i32
    return %c0_i32, %c0_i32_0, %c0_i32_1 : i32, i32, i32
  }
  func.func @transform_2(%arg0: i32) -> (i32, i32, i32) {
    %c0_i32 = arith.constant 0 : i32
    %c0_i32_0 = arith.constant 0 : i32
    %c0_i32_1 = arith.constant 0 : i32
    %c0_i32_2 = arith.constant 0 : i32
    return %c0_i32, %c0_i32_0, %c0_i32_1 : i32, i32, i32
  }
  func.func @transform_3(%arg0: i32) -> (i32, i32, i32) {
    %c0_i32 = arith.constant 0 : i32
    %c0_i32_0 = arith.constant 0 : i32
    %c0_i32_1 = arith.constant 0 : i32
    %c0_i32_2 = arith.constant 0 : i32
    return %c0_i32, %c0_i32_0, %c0_i32_1 : i32, i32, i32
  }
  func.func @transform_4(%arg0: i32) -> (i32, i32) {
    %c0_i32 = arith.constant 0 : i32
    %c0_i32_0 = arith.constant 0 : i32
    %c0_i32_1 = arith.constant 0 : i32
    return %c0_i32, %c0_i32_0 : i32, i32
  }
  func.func @transform_5(%arg0: i32) -> (i32, i32) {
    %c0_i32 = arith.constant 0 : i32
    %c0_i32_0 = arith.constant 0 : i32
    %c0_i32_1 = arith.constant 0 : i32
    return %c0_i32, %c0_i32_0 : i32, i32
  }
  func.func @transform_6(%arg0: i32) -> (i32, i32) {
    %c0_i32 = arith.constant 0 : i32
    %c0_i32_0 = arith.constant 0 : i32
    %c0_i32_1 = arith.constant 0 : i32
    return %c0_i32, %c0_i32_0 : i32, i32
  }
}

</mosaic_0001>

<llo_original>
// kernel: tpu_custom_call.1
$region0: #{tpu_custom_call.1}
  #allocation0 [shape = 'u32[]', space=smem, size = 0x4, offset = 0x4, fixed_abs, tag = 'smem constant byte address 0x4 - core index']
  #allocation1 [shape = 'u32[144,128]{1,0:T(1,128)}', space=vmem, size = 0x12000, scoped, tag = 'internal scratch']
  %s0 = inlined_call_operand.vmem [shape: f32[16,32], index: 0, kind: input, shape index: {}]
  %s1 = inlined_call_operand.vmem [shape: f32[4,32,8], index: 1, kind: input, shape index: {}]
  %s2 = inlined_call_operand.vmem [shape: f32[4,32,8], index: 2, kind: input, shape index: {}]
  %s3 = inlined_call_operand.vmem [shape: f32[4,8,32], index: 3, kind: input, shape index: {}]
  %s4 = inlined_call_operand.vmem [shape: f32[1,32], index: 4, kind: input, shape index: {}]
  %s5 = inlined_call_operand.vmem [shape: f32[16,16], index: 5, kind: input, shape index: {}]
  %s6 = inlined_call_operand.hbm [shape: f32[16,32], index: 6, kind: output, shape index: {}]
  %s7 = sld [smem:[#allocation0]]
  $region34: #{tpu_custom_call.1} parent=0
    _
  %s9 = ssub.s32 1, %s7
  %s10 = scalar_select 0, %s9, %s7
  $region1: #{tpu_custom_call.1} parent=0
    #allocation2 [shape = 'u8[8192]{0}', space=vmem, size = 0x2000, scoped, tag = 'output window, operand 0, single buffered']
    #allocation3 [shape = 's32[1]{0}', space=sflag, size = 0x4, scoped, tag = 'scoped memory for tpu_custom_call.1']
    %11 = vsyncpa [#allocation3], 0
    // Predicated region
    $region2: #{tpu_custom_call.1} parent=1 // pred_check
      _
    $region3: #{tpu_custom_call.1} parent=1 // pred_check_branch
      %13 = sbr.rel (0) target = $region5
    $region4: #{tpu_custom_call.1} parent=1 // pred_region
      _
    $region5: #{tpu_custom_call.1} parent=1 // pred_fallthru
      _
    // Predicated region
    $region6: #{tpu_custom_call.1} parent=1 // pred_check
      _
    $region7: #{tpu_custom_call.1} parent=1 // pred_check_branch
      %15 = sbr.rel (0) target = $region9
    $region8: #{tpu_custom_call.1} parent=1 // pred_region
      _
    $region9: #{tpu_custom_call.1} parent=1 // pred_fallthru
      _
    // Predicated region
    $region10: #{tpu_custom_call.1} parent=1 // pred_check
      _
    $region11: #{tpu_custom_call.1} parent=1 // pred_check_branch
      %17 = sbr.rel (0) target = $region13
    $region12: #{tpu_custom_call.1} parent=1 // pred_region
      _
    $region13: #{tpu_custom_call.1} parent=1 // pred_fallthru
      _
    // Predicated region
    $region14: #{tpu_custom_call.1} parent=1 // pred_check
      _
    $region15: #{tpu_custom_call.1} parent=1 // pred_check_branch
      %19 = sbr.rel (0) target = $region17
    $region16: #{tpu_custom_call.1} parent=1 // pred_region
      _
    $region17: #{tpu_custom_call.1} parent=1 // pred_fallthru
      _
    // Predicated region
    $region18: #{tpu_custom_call.1} parent=1 // pred_check
      _
    $region19: #{tpu_custom_call.1} parent=1 // pred_check_branch
      %21 = sbr.rel (0) target = $region21
    $region20: #{tpu_custom_call.1} parent=1 // pred_region
      _
    $region21: #{tpu_custom_call.1} parent=1 // pred_fallthru
      _
    // Predicated region
    $region22: #{tpu_custom_call.1} parent=1 // pred_check
      _
    $region23: #{tpu_custom_call.1} parent=1 // pred_check_branch
      %23 = sbr.rel (0) target = $region25
    $region24: #{tpu_custom_call.1} parent=1 // pred_region
      _
    $region25: #{tpu_custom_call.1} parent=1 // pred_fallthru
      _
    %v24 = vld [vmem:[%s0] sm:$0xff]
    %v25 = vld [vmem:[%s0 + $0x8] sm:$0xff]
    %v26 = vld [vmem:[%s1] sm:$0xff]
    %v27 = vld [vmem:[%s1 + $0x8] sm:$0xff]
    %v28 = vld [vmem:[%s1 + $0x10] sm:$0xff]
    %v29 = vld [vmem:[%s1 + $0x18] sm:$0xff]
    %v30 = vld [vmem:[%s1 + $0x20] sm:$0xff]
    %v31 = vld [vmem:[%s1 + $0x28] sm:$0xff]
    %v32 = vld [vmem:[%s1 + $0x30] sm:$0xff]
    %v33 = vld [vmem:[%s1 + $0x38] sm:$0xff]
    %v34 = vld [vmem:[%s1 + $0x40] sm:$0xff]
    %v35 = vld [vmem:[%s1 + $0x48] sm:$0xff]
    %v36 = vld [vmem:[%s1 + $0x50] sm:$0xff]
    %v37 = vld [vmem:[%s1 + $0x58] sm:$0xff]
    %v38 = vld [vmem:[%s1 + $0x60] sm:$0xff]
    %v39 = vld [vmem:[%s1 + $0x68] sm:$0xff]
    %v40 = vld [vmem:[%s1 + $0x70] sm:$0xff]
    %v41 = vld [vmem:[%s1 + $0x78] sm:$0xff]
    %vm42 = vcmask 261120
    %v44 = vsel %vm42, %v24, 0
    %v47 = vsel %vm42, %v25, 0
    %49 = vmatprep.subr.mxu0 0.0
    %50 = vmatpush1.msra.mxu0 0.0
    %51 = vmatprep.subr.mxu0 0.0
    %52 = vmatpush1.msra.mxu0 0.0
    %53 = vmatprep.subr.mxu0 0.0
    %54 = vmatpush1.msra.mxu0 0.0
    %55 = vmatprep.subr.mxu0 0.0
    %56 = vmatpush1.msra.mxu0 0.0
    %57 = vmatprep.subr.mxu0 0.0
    %58 = vmatpush1.msra.mxu0 0.0
    %59 = vmatprep.subr.mxu0 0.0
    %60 = vmatpush1.msra.mxu0 0.0
    %61 = vmatprep.subr.mxu0 0.0
    %62 = vmatpush1.msra.mxu0 0.0
    %63 = vmatprep.subr.mxu0 0.0
    %64 = vmatpush1.msra.mxu0 0.0
    %65 = vmatprep.subr.mxu0 0.0
    %66 = vmatpush1.msra.mxu0 0.0
    %67 = vmatprep.subr.mxu0 0.0
    %68 = vmatpush1.msra.mxu0 0.0
    %69 = vmatprep.subr.mxu0 0.0
    %70 = vmatpush1.msra.mxu0 0.0
    %71 = vmatprep.subr.mxu0 0.0
    %72 = vmatpush1.msra.mxu0 0.0
    %73 = vmatprep.subr.mxu0 0.0
    %74 = vmatpush1.msra.mxu0 %v29
    %75 = vmatprep.subr.mxu0 0.0
    %76 = vmatpush1.msra.mxu0 %v28
    %77 = vmatprep.subr.mxu0 0.0
    %78 = vmatpush1.msra.mxu0 %v27
    %79 = vmatprep.subr.mxu0 0.0
    %80 = vmatpush1.msra.mxu0 %v26
    %81 = vmatprep.subr.mxu0 0.0
    %82 = vmatpush2.msra.mxu0 0.0
    %83 = vmatprep.subr.mxu0 0.0
    %84 = vmatpush2.msra.mxu0 0.0
    %85 = vmatprep.subr.mxu0 0.0
    %86 = vmatpush2.msra.mxu0 0.0
    %87 = vmatprep.subr.mxu0 0.0
    %88 = vmatpush2.msra.mxu0 0.0
    %89 = vmatprep.subr.mxu0 0.0
    %90 = vmatpush2.msra.mxu0 0.0
    %91 = vmatprep.subr.mxu0 0.0
    %92 = vmatpush2.msra.mxu0 0.0
    %93 = vmatprep.subr.mxu0 0.0
    %94 = vmatpush2.msra.mxu0 0.0
    %95 = vmatprep.subr.mxu0 0.0
    %96 = vmatpush2.msra.mxu0 0.0
    %97 = vmatprep.subr.mxu0 0.0
    %98 = vmatpush2.msra.mxu0 0.0
    %99 = vmatprep.subr.mxu0 0.0
    %100 = vmatpush2.msra.mxu0 0.0
    %101 = vmatprep.subr.mxu0 0.0
    %102 = vmatpush2.msra.mxu0 0.0
    %103 = vmatprep.subr.mxu0 0.0
    %104 = vmatpush2.msra.mxu0 0.0
    %105 = vmatprep.subr.mxu0 0.0
    %106 = vmatpush2.msra.mxu0 0.0
    %107 = vmatprep.subr.mxu0 0.0
    %108 = vmatpush2.msra.mxu0 0.0
    %109 = vmatprep.subr.mxu0 0.0
    %110 = vmatpush2.msra.mxu0 0.0
    %111 = vmatprep.subr.mxu0 0.0
    %112 = vmatpush2.msra.mxu0 0.0
    %113 = vmatprep.mubr.f32.mxu0 0.0
    %114 = vmatmul.mubr.f32.gmra.mxu0 %v44
    %v115 = vpop.f32.mrf.mxu0
    %v116 = vadd.f32 0.0, %v115
    %v117 = vpop.f32.mrf.mxu0
    %118 = vmatprep.mubr.f32.mxu0 0.0
    %119 = vmatmul.mubr.f32.gmra.mxu0 %v47
    %v120 = vpop.f32.mrf.mxu0
    %v121 = vadd.f32 0.0, %v120
    %v122 = vpop.f32.mrf.mxu0
    %123 = vdwg.mxu0
    %124 = vmatprep.subr.mxu0 0.0
    %125 = vmatpush1.msra.mxu0 0.0
    %126 = vmatprep.subr.mxu0 0.0
    %127 = vmatpush1.msra.mxu0 0.0
    %128 = vmatprep.subr.mxu0 0.0
    %129 = vmatpush1.msra.mxu0 0.0
    %130 = vmatprep.subr.mxu0 0.0
    %131 = vmatpush1.msra.mxu0 0.0
    %132 = vmatprep.subr.mxu0 0.0
    %133 = vmatpush1.msra.mxu0 0.0
    %134 = vmatprep.subr.mxu0 0.0
    %135 = vmatpush1.msra.mxu0 0.0
    %136 = vmatprep.subr.mxu0 0.0
    %137 = vmatpush1.msra.mxu0 0.0
    %138 = vmatprep.subr.mxu0 0.0
    %139 = vmatpush1.msra.mxu0 0.0
    %140 = vmatprep.subr.mxu0 0.0
    %141 = vmatpush1.msra.mxu0 0.0
    %142 = vmatprep.subr.mxu0 0.0
    %143 = vmatpush1.msra.mxu0 0.0
    %144 = vmatprep.subr.mxu0 0.0
    %145 = vmatpush1.msra.mxu0 0.0
    %146 = vmatprep.subr.mxu0 0.0
    %147 = vmatpush1.msra.mxu0 0.0
    %148 = vmatprep.subr.mxu0 0.0
    %149 = vmatpush1.msra.mxu0 %v33
    %150 = vmatprep.subr.mxu0 0.0
    %151 = vmatpush1.msra.mxu0 %v32
    %152 = vmatprep.subr.mxu0 0.0
    %153 = vmatpush1.msra.mxu0 %v31
    %154 = vmatprep.subr.mxu0 0.0
    %155 = vmatpush1.msra.mxu0 %v30
    %156 = vmatprep.subr.mxu0 0.0
    %157 = vmatpush2.msra.mxu0 0.0
    %158 = vmatprep.subr.mxu0 0.0
    %159 = vmatpush2.msra.mxu0 0.0
    %160 = vmatprep.subr.mxu0 0.0
    %161 = vmatpush2.msra.mxu0 0.0
    %162 = vmatprep.subr.mxu0 0.0
    %163 = vmatpush2.msra.mxu0 0.0
    %164 = vmatprep.subr.mxu0 0.0
    %165 = vmatpush2.msra.mxu0 0.0
    %166 = vmatprep.subr.mxu0 0.0
    %167 = vmatpush2.msra.mxu0 0.0
    %168 = vmatprep.subr.mxu0 0.0
    %169 = vmatpush2.msra.mxu0 0.0
    %170 = vmatprep.subr.mxu0 0.0
    %171 = vmatpush2.msra.mxu0 0.0
    %172 = vmatprep.subr.mxu0 0.0
    %173 = vmatpush2.msra.mxu0 0.0
    %174 = vmatprep.subr.mxu0 0.0
    %175 = vmatpush2.msra.mxu0 0.0
    %176 = vmatprep.subr.mxu0 0.0
    %177 = vmatpush2.msra.mxu0 0.0
    %178 = vmatprep.subr.mxu0 0.0
    %179 = vmatpush2.msra.mxu0 0.0
    %180 = vmatprep.subr.mxu0 0.0
    %181 = vmatpush2.msra.mxu0 0.0
    %182 = vmatprep.subr.mxu0 0.0
    %183 = vmatpush2.msra.mxu0 0.0
    %184 = vmatprep.subr.mxu0 0.0
    %185 = vmatpush2.msra.mxu0 0.0
    %186 = vmatprep.subr.mxu0 0.0
    %187 = vmatpush2.msra.mxu0 0.0
    %188 = vmatprep.mubr.f32.mxu0 0.0
    %189 = vmatmul.mubr.f32.gmra.mxu0 %v44
    %v190 = vpop.f32.mrf.mxu0
    %v191 = vadd.f32 0.0, %v190
    %v192 = vpop.f32.mrf.mxu0
    %193 = vmatprep.mubr.f32.mxu0 0.0
    %194 = vmatmul.mubr.f32.gmra.mxu0 %v47
    %v195 = vpop.f32.mrf.mxu0
    %v196 = vadd.f32 0.0, %v195
    %v197 = vpop.f32.mrf.mxu0
    %198 = vdwg.mxu0
    %199 = vmatprep.subr.mxu0 0.0
    %200 = vmatpush1.msra.mxu0 0.0
    %201 = vmatprep.subr.mxu0 0.0
    %202 = vmatpush1.msra.mxu0 0.0
    %203 = vmatprep.subr.mxu0 0.0
    %204 = vmatpush1.msra.mxu0 0.0
    %205 = vmatprep.subr.mxu0 0.0
    %206 = vmatpush1.msra.mxu0 0.0
    %207 = vmatprep.subr.mxu0 0.0
    %208 = vmatpush1.msra.mxu0 0.0
    %209 = vmatprep.subr.mxu0 0.0
    %210 = vmatpush1.msra.mxu0 0.0
    %211 = vmatprep.subr.mxu0 0.0
    %212 = vmatpush1.msra.mxu0 0.0
    %213 = vmatprep.subr.mxu0 0.0
    %214 = vmatpush1.msra.mxu0 0.0
    %215 = vmatprep.subr.mxu0 0.0
    %216 = vmatpush1.msra.mxu0 0.0
    %217 = vmatprep.subr.mxu0 0.0
    %218 = vmatpush1.msra.mxu0 0.0
    %219 = vmatprep.subr.mxu0 0.0
    %220 = vmatpush1.msra.mxu0 0.0
    %221 = vmatprep.subr.mxu0 0.0
    %222 = vmatpush1.msra.mxu0 0.0
    %223 = vmatprep.subr.mxu0 0.0
    %224 = vmatpush1.msra.mxu0 %v37
    %225 = vmatprep.subr.mxu0 0.0
    %226 = vmatpush1.msra.mxu0 %v36
    %227 = vmatprep.subr.mxu0 0.0
    %228 = vmatpush1.msra.mxu0 %v35
    %229 = vmatprep.subr.mxu0 0.0
    %230 = vmatpush1.msra.mxu0 %v34
    %231 = vmatprep.subr.mxu0 0.0
    %232 = vmatpush2.msra.mxu0 0.0
    %233 = vmatprep.subr.mxu0 0.0
    %234 = vmatpush2.msra.mxu0 0.0
    %235 = vmatprep.subr.mxu0 0.0
    %236 = vmatpush2.msra.mxu0 0.0
    %237 = vmatprep.subr.mxu0 0.0
    %238 = vmatpush2.msra.mxu0 0.0
    %239 = vmatprep.subr.mxu0 0.0
    %240 = vmatpush2.msra.mxu0 0.0
    %241 = vmatprep.subr.mxu0 0.0
    %242 = vmatpush2.msra.mxu0 0.0
    %243 = vmatprep.subr.mxu0 0.0
    %244 = vmatpush2.msra.mxu0 0.0
    %245 = vmatprep.subr.mxu0 0.0
    %246 = vmatpush2.msra.mxu0 0.0
    %247 = vmatprep.subr.mxu0 0.0
    %248 = vmatpush2.msra.mxu0 0.0
    %249 = vmatprep.subr.mxu0 0.0
    %250 = vmatpush2.msra.mxu0 0.0
    %251 = vmatprep.subr.mxu0 0.0
    %252 = vmatpush2.msra.mxu0 0.0
    %253 = vmatprep.subr.mxu0 0.0
    %254 = vmatpush2.msra.mxu0 0.0
    %255 = vmatprep.subr.mxu0 0.0
    %256 = vmatpush2.msra.mxu0 0.0
    %257 = vmatprep.subr.mxu0 0.0
    %258 = vmatpush2.msra.mxu0 0.0
    %259 = vmatprep.subr.mxu0 0.0
    %260 = vmatpush2.msra.mxu0 0.0
    %261 = vmatprep.subr.mxu0 0.0
    %262 = vmatpush2.msra.mxu0 0.0
    %263 = vmatprep.mubr.f32.mxu0 0.0
    %264 = vmatmul.mubr.f32.gmra.mxu0 %v44
    %v265 = vpop.f32.mrf.mxu0
    %v266 = vadd.f32 0.0, %v265
    %v267 = vpop.f32.mrf.mxu0
    %268 = vmatprep.mubr.f32.mxu0 0.0
    %269 = vmatmul.mubr.f32.gmra.mxu0 %v47
    %v270 = vpop.f32.mrf.mxu0
    %v271 = vadd.f32 0.0, %v270
    %v272 = vpop.f32.mrf.mxu0
    %273 = vdwg.mxu0
    %274 = vmatprep.subr.mxu0 0.0
    %275 = vmatpush1.msra.mxu0 0.0
    %276 = vmatprep.subr.mxu0 0.0
    %277 = vmatpush1.msra.mxu0 0.0
    %278 = vmatprep.subr.mxu0 0.0
    %279 = vmatpush1.msra.mxu0 0.0
    %280 = vmatprep.subr.mxu0 0.0
    %281 = vmatpush1.msra.mxu0 0.0
    %282 = vmatprep.subr.mxu0 0.0
    %283 = vmatpush1.msra.mxu0 0.0
    %284 = vmatprep.subr.mxu0 0.0
    %285 = vmatpush1.msra.mxu0 0.0
    %286 = vmatprep.subr.mxu0 0.0
    %287 = vmatpush1.msra.mxu0 0.0
    %288 = vmatprep.subr.mxu0 0.0
    %289 = vmatpush1.msra.mxu0 0.0
    %290 = vmatprep.subr.mxu0 0.0
    %291 = vmatpush1.msra.mxu0 0.0
    %292 = vmatprep.subr.mxu0 0.0
    %293 = vmatpush1.msra.mxu0 0.0
    %294 = vmatprep.subr.mxu0 0.0
    %295 = vmatpush1.msra.mxu0 0.0
    %296 = vmatprep.subr.mxu0 0.0
    %297 = vmatpush1.msra.mxu0 0.0
    %298 = vmatprep.subr.mxu0 0.0
    %299 = vmatpush1.msra.mxu0 %v41
    %300 = vmatprep.subr.mxu0 0.0
    %301 = vmatpush1.msra.mxu0 %v40
    %302 = vmatprep.subr.mxu0 0.0
    %303 = vmatpush1.msra.mxu0 %v39
    %304 = vmatprep.subr.mxu0 0.0
    %305 = vmatpush1.msra.mxu0 %v38
    %306 = vmatprep.subr.mxu0 0.0
    %307 = vmatpush2.msra.mxu0 0.0
    %308 = vmatprep.subr.mxu0 0.0
    %309 = vmatpush2.msra.mxu0 0.0
    %310 = vmatprep.subr.mxu0 0.0
    %311 = vmatpush2.msra.mxu0 0.0
    %312 = vmatprep.subr.mxu0 0.0
    %313 = vmatpush2.msra.mxu0 0.0
    %314 = vmatprep.subr.mxu0 0.0
    %315 = vmatpush2.msra.mxu0 0.0
    %316 = vmatprep.subr.mxu0 0.0
    %317 = vmatpush2.msra.mxu0 0.0
    %318 = vmatprep.subr.mxu0 0.0
    %319 = vmatpush2.msra.mxu0 0.0
    %320 = vmatprep.subr.mxu0 0.0
    %321 = vmatpush2.msra.mxu0 0.0
    %322 = vmatprep.subr.mxu0 0.0
    %323 = vmatpush2.msra.mxu0 0.0
    %324 = vmatprep.subr.mxu0 0.0
    %325 = vmatpush2.msra.mxu0 0.0
    %326 = vmatprep.subr.mxu0 0.0
    %327 = vmatpush2.msra.mxu0 0.0
    %328 = vmatprep.subr.mxu0 0.0
    %329 = vmatpush2.msra.mxu0 0.0
    %330 = vmatprep.subr.mxu0 0.0
    %331 = vmatpush2.msra.mxu0 0.0
    %332 = vmatprep.subr.mxu0 0.0
    %333 = vmatpush2.msra.mxu0 0.0
    %334 = vmatprep.subr.mxu0 0.0
    %335 = vmatpush2.msra.mxu0 0.0
    %336 = vmatprep.subr.mxu0 0.0
    %337 = vmatpush2.msra.mxu0 0.0
    %338 = vmatprep.mubr.f32.mxu0 0.0
    %339 = vmatmul.mubr.f32.gmra.mxu0 %v44
    %v340 = vpop.f32.mrf.mxu0
    %v341 = vadd.f32 0.0, %v340
    %v342 = vpop.f32.mrf.mxu0
    %343 = vmatprep.mubr.f32.mxu0 0.0
    %344 = vmatmul.mubr.f32.gmra.mxu0 %v47
    %v345 = vpop.f32.mrf.mxu0
    %v346 = vadd.f32 0.0, %v345
    %v347 = vpop.f32.mrf.mxu0
    %348 = vdwg.mxu0
    %v349 = vld [vmem:[%s2] sm:$0xff]
    %v350 = vld [vmem:[%s2 + $0x8] sm:$0xff]
    %v351 = vld [vmem:[%s2 + $0x10] sm:$0xff]
    %v352 = vld [vmem:[%s2 + $0x18] sm:$0xff]
    %v353 = vld [vmem:[%s2 + $0x20] sm:$0xff]
    %v354 = vld [vmem:[%s2 + $0x28] sm:$0xff]
    %v355 = vld [vmem:[%s2 + $0x30] sm:$0xff]
    %v356 = vld [vmem:[%s2 + $0x38] sm:$0xff]
    %v357 = vld [vmem:[%s2 + $0x40] sm:$0xff]
    %v358 = vld [vmem:[%s2 + $0x48] sm:$0xff]
    %v359 = vld [vmem:[%s2 + $0x50] sm:$0xff]
    %v360 = vld [vmem:[%s2 + $0x58] sm:$0xff]
    %v361 = vld [vmem:[%s2 + $0x60] sm:$0xff]
    %v362 = vld [vmem:[%s2 + $0x68] sm:$0xff]
    %v363 = vld [vmem:[%s2 + $0x70] sm:$0xff]
    %v364 = vld [vmem:[%s2 + $0x78] sm:$0xff]
    %365 = vmatprep.subr.mxu0 0.0
    %366 = vmatpush1.msra.mxu0 0.0
    %367 = vmatprep.subr.mxu0 0.0
    %368 = vmatpush1.msra.mxu0 0.0
    %369 = vmatprep.subr.mxu0 0.0
    %370 = vmatpush1.msra.mxu0 0.0
    %371 = vmatprep.subr.mxu0 0.0
    %372 = vmatpush1.msra.mxu0 0.0
    %373 = vmatprep.subr.mxu0 0.0
    %374 = vmatpush1.msra.mxu0 0.0
    %375 = vmatprep.subr.mxu0 0.0
    %376 = vmatpush1.msra.mxu0 0.0
    %377 = vmatprep.subr.mxu0 0.0
    %378 = vmatpush1.msra.mxu0 0.0
    %379 = vmatprep.subr.mxu0 0.0
    %380 = vmatpush1.msra.mxu0 0.0
    %381 = vmatprep.subr.mxu0 0.0
    %382 = vmatpush1.msra.mxu0 0.0
    %383 = vmatprep.subr.mxu0 0.0
    %384 = vmatpush1.msra.mxu0 0.0
    %385 = vmatprep.subr.mxu0 0.0
    %386 = vmatpush1.msra.mxu0 0.0
    %387 = vmatprep.subr.mxu0 0.0
    %388 = vmatpush1.msra.mxu0 0.0
    %389 = vmatprep.subr.mxu0 0.0
    %390 = vmatpush1.msra.mxu0 %v352
    %391 = vmatprep.subr.mxu0 0.0
    %392 = vmatpush1.msra.mxu0 %v351
    %393 = vmatprep.subr.mxu0 0.0
    %394 = vmatpush1.msra.mxu0 %v350
    %395 = vmatprep.subr.mxu0 0.0
    %396 = vmatpush1.msra.mxu0 %v349
    %397 = vmatprep.subr.mxu0 0.0
    %398 = vmatpush2.msra.mxu0 0.0
    %399 = vmatprep.subr.mxu0 0.0
    %400 = vmatpush2.msra.mxu0 0.0
    %401 = vmatprep.subr.mxu0 0.0
    %402 = vmatpush2.msra.mxu0 0.0
    %403 = vmatprep.subr.mxu0 0.0
    %404 = vmatpush2.msra.mxu0 0.0
    %405 = vmatprep.subr.mxu0 0.0
    %406 = vmatpush2.msra.mxu0 0.0
    %407 = vmatprep.subr.mxu0 0.0
    %408 = vmatpush2.msra.mxu0 0.0
    %409 = vmatprep.subr.mxu0 0.0
    %410 = vmatpush2.msra.mxu0 0.0
    %411 = vmatprep.subr.mxu0 0.0
    %412 = vmatpush2.msra.mxu0 0.0
    %413 = vmatprep.subr.mxu0 0.0
    %414 = vmatpush2.msra.mxu0 0.0
    %415 = vmatprep.subr.mxu0 0.0
    %416 = vmatpush2.msra.mxu0 0.0
    %417 = vmatprep.subr.mxu0 0.0
    %418 = vmatpush2.msra.mxu0 0.0
    %419 = vmatprep.subr.mxu0 0.0
    %420 = vmatpush2.msra.mxu0 0.0
    %421 = vmatprep.subr.mxu0 0.0
    %422 = vmatpush2.msra.mxu0 0.0
    %423 = vmatprep.subr.mxu0 0.0
    %424 = vmatpush2.msra.mxu0 0.0
    %425 = vmatprep.subr.mxu0 0.0
    %426 = vmatpush2.msra.mxu0 0.0
    %427 = vmatprep.subr.mxu0 0.0
    %428 = vmatpush2.msra.mxu0 0.0
    %429 = vmatprep.mubr.f32.mxu0 0.0
    %430 = vmatmul.mubr.f32.gmra.mxu0 %v44
    %v431 = vpop.f32.mrf.mxu0
    %v432 = vadd.f32 0.0, %v431
    %v433 = vpop.f32.mrf.mxu0
    %434 = vmatprep.mubr.f32.mxu0 0.0
    %435 = vmatmul.mubr.f32.gmra.mxu0 %v47
    %v436 = vpop.f32.mrf.mxu0
    %v437 = vadd.f32 0.0, %v436
    %v438 = vpop.f32.mrf.mxu0
    %439 = vdwg.mxu0
    %440 = vmatprep.subr.mxu0 0.0
    %441 = vmatpush1.msra.mxu0 0.0
    %442 = vmatprep.subr.mxu0 0.0
    %443 = vmatpush1.msra.mxu0 0.0
    %444 = vmatprep.subr.mxu0 0.0
    %445 = vmatpush1.msra.mxu0 0.0
    %446 = vmatprep.subr.mxu0 0.0
    %447 = vmatpush1.msra.mxu0 0.0
    %448 = vmatprep.subr.mxu0 0.0
    %449 = vmatpush1.msra.mxu0 0.0
    %450 = vmatprep.subr.mxu0 0.0
    %451 = vmatpush1.msra.mxu0 0.0
    %452 = vmatprep.subr.mxu0 0.0
    %453 = vmatpush1.msra.mxu0 0.0
    %454 = vmatprep.subr.mxu0 0.0
    %455 = vmatpush1.msra.mxu0 0.0
    %456 = vmatprep.subr.mxu0 0.0
    %457 = vmatpush1.msra.mxu0 0.0
    %458 = vmatprep.subr.mxu0 0.0
    %459 = vmatpush1.msra.mxu0 0.0
    %460 = vmatprep.subr.mxu0 0.0
    %461 = vmatpush1.msra.mxu0 0.0
    %462 = vmatprep.subr.mxu0 0.0
    %463 = vmatpush1.msra.mxu0 0.0
    %464 = vmatprep.subr.mxu0 0.0
    %465 = vmatpush1.msra.mxu0 %v356
    %466 = vmatprep.subr.mxu0 0.0
    %467 = vmatpush1.msra.mxu0 %v355
    %468 = vmatprep.subr.mxu0 0.0
    %469 = vmatpush1.msra.mxu0 %v354
    %470 = vmatprep.subr.mxu0 0.0
    %471 = vmatpush1.msra.mxu0 %v353
    %472 = vmatprep.subr.mxu0 0.0
    %473 = vmatpush2.msra.mxu0 0.0
    %474 = vmatprep.subr.mxu0 0.0
    %475 = vmatpush2.msra.mxu0 0.0
    %476 = vmatprep.subr.mxu0 0.0
    %477 = vmatpush2.msra.mxu0 0.0
    %478 = vmatprep.subr.mxu0 0.0
    %479 = vmatpush2.msra.mxu0 0.0
    %480 = vmatprep.subr.mxu0 0.0
    %481 = vmatpush2.msra.mxu0 0.0
    %482 = vmatprep.subr.mxu0 0.0
    %483 = vmatpush2.msra.mxu0 0.0
    %484 = vmatprep.subr.mxu0 0.0
    %485 = vmatpush2.msra.mxu0 0.0
    %486 = vmatprep.subr.mxu0 0.0
    %487 = vmatpush2.msra.mxu0 0.0
    %488 = vmatprep.subr.mxu0 0.0
    %489 = vmatpush2.msra.mxu0 0.0
    %490 = vmatprep.subr.mxu0 0.0
    %491 = vmatpush2.msra.mxu0 0.0
    %492 = vmatprep.subr.mxu0 0.0
    %493 = vmatpush2.msra.mxu0 0.0
    %494 = vmatprep.subr.mxu0 0.0
    %495 = vmatpush2.msra.mxu0 0.0
    %496 = vmatprep.subr.mxu0 0.0
    %497 = vmatpush2.msra.mxu0 0.0
    %498 = vmatprep.subr.mxu0 0.0
    %499 = vmatpush2.msra.mxu0 0.0
    %500 = vmatprep.subr.mxu0 0.0
    %501 = vmatpush2.msra.mxu0 0.0
    %502 = vmatprep.subr.mxu0 0.0
    %503 = vmatpush2.msra.mxu0 0.0
    %504 = vmatprep.mubr.f32.mxu0 0.0
    %505 = vmatmul.mubr.f32.gmra.mxu0 %v44
    %v506 = vpop.f32.mrf.mxu0
    %v507 = vadd.f32 0.0, %v506
    %v508 = vpop.f32.mrf.mxu0
    %509 = vmatprep.mubr.f32.mxu0 0.0
    %510 = vmatmul.mubr.f32.gmra.mxu0 %v47
    %v511 = vpop.f32.mrf.mxu0
    %v512 = vadd.f32 0.0, %v511
    %v513 = vpop.f32.mrf.mxu0
    %514 = vdwg.mxu0
    %515 = vmatprep.subr.mxu0 0.0
    %516 = vmatpush1.msra.mxu0 0.0
    %517 = vmatprep.subr.mxu0 0.0
    %518 = vmatpush1.msra.mxu0 0.0
    %519 = vmatprep.subr.mxu0 0.0
    %520 = vmatpush1.msra.mxu0 0.0
    %521 = vmatprep.subr.mxu0 0.0
    %522 = vmatpush1.msra.mxu0 0.0
    %523 = vmatprep.subr.mxu0 0.0
    %524 = vmatpush1.msra.mxu0 0.0
    %525 = vmatprep.subr.mxu0 0.0
    %526 = vmatpush1.msra.mxu0 0.0
    %527 = vmatprep.subr.mxu0 0.0
    %528 = vmatpush1.msra.mxu0 0.0
    %529 = vmatprep.subr.mxu0 0.0
    %530 = vmatpush1.msra.mxu0 0.0
    %531 = vmatprep.subr.mxu0 0.0
    %532 = vmatpush1.msra.mxu0 0.0
    %533 = vmatprep.subr.mxu0 0.0
    %534 = vmatpush1.msra.mxu0 0.0
    %535 = vmatprep.subr.mxu0 0.0
    %536 = vmatpush1.msra.mxu0 0.0
    %537 = vmatprep.subr.mxu0 0.0
    %538 = vmatpush1.msra.mxu0 0.0
    %539 = vmatprep.subr.mxu0 0.0
    %540 = vmatpush1.msra.mxu0 %v360
    %541 = vmatprep.subr.mxu0 0.0
    %542 = vmatpush1.msra.mxu0 %v359
    %543 = vmatprep.subr.mxu0 0.0
    %544 = vmatpush1.msra.mxu0 %v358
    %545 = vmatprep.subr.mxu0 0.0
    %546 = vmatpush1.msra.mxu0 %v357
    %547 = vmatprep.subr.mxu0 0.0
    %548 = vmatpush2.msra.mxu0 0.0
    %549 = vmatprep.subr.mxu0 0.0
    %550 = vmatpush2.msra.mxu0 0.0
    %551 = vmatprep.subr.mxu0 0.0
    %552 = vmatpush2.msra.mxu0 0.0
    %553 = vmatprep.subr.mxu0 0.0
    %554 = vmatpush2.msra.mxu0 0.0
    %555 = vmatprep.subr.mxu0 0.0
    %556 = vmatpush2.msra.mxu0 0.0
    %557 = vmatprep.subr.mxu0 0.0
    %558 = vmatpush2.msra.mxu0 0.0
    %559 = vmatprep.subr.mxu0 0.0
    %560 = vmatpush2.msra.mxu0 0.0
    %561 = vmatprep.subr.mxu0 0.0
    %562 = vmatpush2.msra.mxu0 0.0
    %563 = vmatprep.subr.mxu0 0.0
    %564 = vmatpush2.msra.mxu0 0.0
    %565 = vmatprep.subr.mxu0 0.0
    %566 = vmatpush2.msra.mxu0 0.0
    %567 = vmatprep.subr.mxu0 0.0
    %568 = vmatpush2.msra.mxu0 0.0
    %569 = vmatprep.subr.mxu0 0.0
    %570 = vmatpush2.msra.mxu0 0.0
    %571 = vmatprep.subr.mxu0 0.0
    %572 = vmatpush2.msra.mxu0 0.0
    %573 = vmatprep.subr.mxu0 0.0
    %574 = vmatpush2.msra.mxu0 0.0
    %575 = vmatprep.subr.mxu0 0.0
    %576 = vmatpush2.msra.mxu0 0.0
    %577 = vmatprep.subr.mxu0 0.0
    %578 = vmatpush2.msra.mxu0 0.0
    %579 = vmatprep.mubr.f32.mxu0 0.0
    %580 = vmatmul.mubr.f32.gmra.mxu0 %v44
    %v581 = vpop.f32.mrf.mxu0
    %v582 = vadd.f32 0.0, %v581
    %v583 = vpop.f32.mrf.mxu0
    %584 = vmatprep.mubr.f32.mxu0 0.0
    %585 = vmatmul.mubr.f32.gmra.mxu0 %v47
    %v586 = vpop.f32.mrf.mxu0
    %v587 = vadd.f32 0.0, %v586
    %v588 = vpop.f32.mrf.mxu0
    %589 = vdwg.mxu0
    %590 = vmatprep.subr.mxu0 0.0
    %591 = vmatpush1.msra.mxu0 0.0
    %592 = vmatprep.subr.mxu0 0.0
    %593 = vmatpush1.msra.mxu0 0.0
    %594 = vmatprep.subr.mxu0 0.0
    %595 = vmatpush1.msra.mxu0 0.0
    %596 = vmatprep.subr.mxu0 0.0
    %597 = vmatpush1.msra.mxu0 0.0
    %598 = vmatprep.subr.mxu0 0.0
    %599 = vmatpush1.msra.mxu0 0.0
    %600 = vmatprep.subr.mxu0 0.0
    %601 = vmatpush1.msra.mxu0 0.0
    %602 = vmatprep.subr.mxu0 0.0
    %603 = vmatpush1.msra.mxu0 0.0
    %604 = vmatprep.subr.mxu0 0.0
    %605 = vmatpush1.msra.mxu0 0.0
    %606 = vmatprep.subr.mxu0 0.0
    %607 = vmatpush1.msra.mxu0 0.0
    %608 = vmatprep.subr.mxu0 0.0
    %609 = vmatpush1.msra.mxu0 0.0
    %610 = vmatprep.subr.mxu0 0.0
    %611 = vmatpush1.msra.mxu0 0.0
    %612 = vmatprep.subr.mxu0 0.0
    %613 = vmatpush1.msra.mxu0 0.0
    %614 = vmatprep.subr.mxu0 0.0
    %615 = vmatpush1.msra.mxu0 %v364
    %616 = vmatprep.subr.mxu0 0.0
    %617 = vmatpush1.msra.mxu0 %v363
    %618 = vmatprep.subr.mxu0 0.0
    %619 = vmatpush1.msra.mxu0 %v362
    %620 = vmatprep.subr.mxu0 0.0
    %621 = vmatpush1.msra.mxu0 %v361
    %622 = vmatprep.subr.mxu0 0.0
    %623 = vmatpush2.msra.mxu0 0.0
    %624 = vmatprep.subr.mxu0 0.0
    %625 = vmatpush2.msra.mxu0 0.0
    %626 = vmatprep.subr.mxu0 0.0
    %627 = vmatpush2.msra.mxu0 0.0
    %628 = vmatprep.subr.mxu0 0.0
    %629 = vmatpush2.msra.mxu0 0.0
    %630 = vmatprep.subr.mxu0 0.0
    %631 = vmatpush2.msra.mxu0 0.0
    %632 = vmatprep.subr.mxu0 0.0
    %633 = vmatpush2.msra.mxu0 0.0
    %634 = vmatprep.subr.mxu0 0.0
    %635 = vmatpush2.msra.mxu0 0.0
    %636 = vmatprep.subr.mxu0 0.0
    %637 = vmatpush2.msra.mxu0 0.0
    %638 = vmatprep.subr.mxu0 0.0
    %639 = vmatpush2.msra.mxu0 0.0
    %640 = vmatprep.subr.mxu0 0.0
    %641 = vmatpush2.msra.mxu0 0.0
    %642 = vmatprep.subr.mxu0 0.0
    %643 = vmatpush2.msra.mxu0 0.0
    %644 = vmatprep.subr.mxu0 0.0
    %645 = vmatpush2.msra.mxu0 0.0
    %646 = vmatprep.subr.mxu0 0.0
    %647 = vmatpush2.msra.mxu0 0.0
    %648 = vmatprep.subr.mxu0 0.0
    %649 = vmatpush2.msra.mxu0 0.0
    %650 = vmatprep.subr.mxu0 0.0
    %651 = vmatpush2.msra.mxu0 0.0
    %652 = vmatprep.subr.mxu0 0.0
    %653 = vmatpush2.msra.mxu0 0.0
    %654 = vmatprep.mubr.f32.mxu0 0.0
    %655 = vmatmul.mubr.f32.gmra.mxu0 %v44
    %v656 = vpop.f32.mrf.mxu0
    %v657 = vadd.f32 0.0, %v656
    %v658 = vpop.f32.mrf.mxu0
    %659 = vmatprep.mubr.f32.mxu0 0.0
    %660 = vmatmul.mubr.f32.gmra.mxu0 %v47
    %v661 = vpop.f32.mrf.mxu0
    %v662 = vadd.f32 0.0, %v661
    %v663 = vpop.f32.mrf.mxu0
    %664 = vdwg.mxu0
    %vm665 = vcmask 64512
    %v667 = vsel %vm665, %v116, 0
    %v670 = vsel %vm665, %v121, 0
    %672 = vmatprep.subr.mxu0 0.0
    %673 = vmatpush1.xpose.msra.mxu0 0.0
    %674 = vmatprep.subr.mxu0 0.0
    %675 = vmatpush1.xpose.msra.mxu0 0.0
    %676 = vmatprep.subr.mxu0 0.0
    %677 = vmatpush1.xpose.msra.mxu0 0.0
    %678 = vmatprep.subr.mxu0 0.0
    %679 = vmatpush1.xpose.msra.mxu0 0.0
    %680 = vmatprep.subr.mxu0 0.0
    %681 = vmatpush1.xpose.msra.mxu0 0.0
    %682 = vmatprep.subr.mxu0 0.0
    %683 = vmatpush1.xpose.msra.mxu0 0.0
    %684 = vmatprep.subr.mxu0 0.0
    %685 = vmatpush1.xpose.msra.mxu0 0.0
    %686 = vmatprep.subr.mxu0 0.0
    %687 = vmatpush1.xpose.msra.mxu0 0.0
    %688 = vmatprep.subr.mxu0 0.0
    %689 = vmatpush1.xpose.msra.mxu0 0.0
    %690 = vmatprep.subr.mxu0 0.0
    %691 = vmatpush1.xpose.msra.mxu0 0.0
    %692 = vmatprep.subr.mxu0 0.0
    %693 = vmatpush1.xpose.msra.mxu0 0.0
    %694 = vmatprep.subr.mxu0 0.0
    %695 = vmatpush1.xpose.msra.mxu0 0.0
    %696 = vmatprep.subr.mxu0 0.0
    %697 = vmatpush1.xpose.msra.mxu0 0.0
    %698 = vmatprep.subr.mxu0 0.0
    %699 = vmatpush1.xpose.msra.mxu0 0.0
    %700 = vmatprep.subr.mxu0 0.0
    %701 = vmatpush1.xpose.msra.mxu0 %v670
    %702 = vmatprep.subr.mxu0 0.0
    %703 = vmatpush1.xpose.msra.mxu0 %v667
    %704 = vmatprep.subr.mxu0 0.0
    %705 = vmatpush2.xpose.msra.mxu0 0.0
    %706 = vmatprep.subr.mxu0 0.0
    %707 = vmatpush2.xpose.msra.mxu0 0.0
    %708 = vmatprep.subr.mxu0 0.0
    %709 = vmatpush2.xpose.msra.mxu0 0.0
    %710 = vmatprep.subr.mxu0 0.0
    %711 = vmatpush2.xpose.msra.mxu0 0.0
    %712 = vmatprep.subr.mxu0 0.0
    %713 = vmatpush2.xpose.msra.mxu0 0.0
    %714 = vmatprep.subr.mxu0 0.0
    %715 = vmatpush2.xpose.msra.mxu0 0.0
    %716 = vmatprep.subr.mxu0 0.0
    %717 = vmatpush2.xpose.msra.mxu0 0.0
    %718 = vmatprep.subr.mxu0 0.0
    %719 = vmatpush2.xpose.msra.mxu0 0.0
    %720 = vmatprep.subr.mxu0 0.0
    %721 = vmatpush2.xpose.msra.mxu0 0.0
    %722 = vmatprep.subr.mxu0 0.0
    %723 = vmatpush2.xpose.msra.mxu0 0.0
    %724 = vmatprep.subr.mxu0 0.0
    %725 = vmatpush2.xpose.msra.mxu0 0.0
    %726 = vmatprep.subr.mxu0 0.0
    %727 = vmatpush2.xpose.msra.mxu0 0.0
    %728 = vmatprep.subr.mxu0 0.0
    %729 = vmatpush2.xpose.msra.mxu0 0.0
    %730 = vmatprep.subr.mxu0 0.0
    %731 = vmatpush2.xpose.msra.mxu0 0.0
    %732 = vmatprep.subr.mxu0 0.0
    %733 = vmatpush2.xpose.msra.mxu0 0.0
    %734 = vmatprep.subr.mxu0 0.0
    %735 = vmatpush2.xpose.msra.mxu0 0.0
    %736 = vmatprep.mubr.f32.mxu0 0.0
    %737 = vmatmul.mubr.f32.gmra.mxu0 %v667
    %v738 = vpop.f32.mrf.mxu0
    %v739 = vadd.f32 0.0, %v738
    %v740 = vpop.f32.mrf.mxu0
    %741 = vmatprep.mubr.f32.mxu0 0.0
    %742 = vmatmul.mubr.f32.gmra.mxu0 %v670
    %v743 = vpop.f32.mrf.mxu0
    %v744 = vadd.f32 0.0, %v743
    %v745 = vpop.f32.mrf.mxu0
    %746 = vdwg.mxu0
    %v748 = vsel %vm665, %v191, 0
    %v751 = vsel %vm665, %v196, 0
    %753 = vmatprep.subr.mxu0 0.0
    %754 = vmatpush1.xpose.msra.mxu0 0.0
    %755 = vmatprep.subr.mxu0 0.0
    %756 = vmatpush1.xpose.msra.mxu0 0.0
    %757 = vmatprep.subr.mxu0 0.0
    %758 = vmatpush1.xpose.msra.mxu0 0.0
    %759 = vmatprep.subr.mxu0 0.0
    %760 = vmatpush1.xpose.msra.mxu0 0.0
    %761 = vmatprep.subr.mxu0 0.0
    %762 = vmatpush1.xpose.msra.mxu0 0.0
    %763 = vmatprep.subr.mxu0 0.0
    %764 = vmatpush1.xpose.msra.mxu0 0.0
    %765 = vmatprep.subr.mxu0 0.0
    %766 = vmatpush1.xpose.msra.mxu0 0.0
    %767 = vmatprep.subr.mxu0 0.0
    %768 = vmatpush1.xpose.msra.mxu0 0.0
    %769 = vmatprep.subr.mxu0 0.0
    %770 = vmatpush1.xpose.msra.mxu0 0.0
    %771 = vmatprep.subr.mxu0 0.0
    %772 = vmatpush1.xpose.msra.mxu0 0.0
    %773 = vmatprep.subr.mxu0 0.0
    %774 = vmatpush1.xpose.msra.mxu0 0.0
    %775 = vmatprep.subr.mxu0 0.0
    %776 = vmatpush1.xpose.msra.mxu0 0.0
    %777 = vmatprep.subr.mxu0 0.0
    %778 = vmatpush1.xpose.msra.mxu0 0.0
    %779 = vmatprep.subr.mxu0 0.0
    %780 = vmatpush1.xpose.msra.mxu0 0.0
    %781 = vmatprep.subr.mxu0 0.0
    %782 = vmatpush1.xpose.msra.mxu0 %v751
    %783 = vmatprep.subr.mxu0 0.0
    %784 = vmatpush1.xpose.msra.mxu0 %v748
    %785 = vmatprep.subr.mxu0 0.0
    %786 = vmatpush2.xpose.msra.mxu0 0.0
    %787 = vmatprep.subr.mxu0 0.0
    %788 = vmatpush2.xpose.msra.mxu0 0.0
    %789 = vmatprep.subr.mxu0 0.0
    %790 = vmatpush2.xpose.msra.mxu0 0.0
    %791 = vmatprep.subr.mxu0 0.0
    %792 = vmatpush2.xpose.msra.mxu0 0.0
    %793 = vmatprep.subr.mxu0 0.0
    %794 = vmatpush2.xpose.msra.mxu0 0.0
    %795 = vmatprep.subr.mxu0 0.0
    %796 = vmatpush2.xpose.msra.mxu0 0.0
    %797 = vmatprep.subr.mxu0 0.0
    %798 = vmatpush2.xpose.msra.mxu0 0.0
    %799 = vmatprep.subr.mxu0 0.0
    %800 = vmatpush2.xpose.msra.mxu0 0.0
    %801 = vmatprep.subr.mxu0 0.0
    %802 = vmatpush2.xpose.msra.mxu0 0.0
    %803 = vmatprep.subr.mxu0 0.0
    %804 = vmatpush2.xpose.msra.mxu0 0.0
    %805 = vmatprep.subr.mxu0 0.0
    %806 = vmatpush2.xpose.msra.mxu0 0.0
    %807 = vmatprep.subr.mxu0 0.0
    %808 = vmatpush2.xpose.msra.mxu0 0.0
    %809 = vmatprep.subr.mxu0 0.0
    %810 = vmatpush2.xpose.msra.mxu0 0.0
    %811 = vmatprep.subr.mxu0 0.0
    %812 = vmatpush2.xpose.msra.mxu0 0.0
    %813 = vmatprep.subr.mxu0 0.0
    %814 = vmatpush2.xpose.msra.mxu0 0.0
    %815 = vmatprep.subr.mxu0 0.0
    %816 = vmatpush2.xpose.msra.mxu0 0.0
    %817 = vmatprep.mubr.f32.mxu0 0.0
    %818 = vmatmul.mubr.f32.gmra.mxu0 %v748
    %v819 = vpop.f32.mrf.mxu0
    %v820 = vadd.f32 0.0, %v819
    %v821 = vpop.f32.mrf.mxu0
    %822 = vmatprep.mubr.f32.mxu0 0.0
    %823 = vmatmul.mubr.f32.gmra.mxu0 %v751
    %v824 = vpop.f32.mrf.mxu0
    %v825 = vadd.f32 0.0, %v824
    %v826 = vpop.f32.mrf.mxu0
    %827 = vdwg.mxu0
    %v829 = vsel %vm665, %v266, 0
    %v832 = vsel %vm665, %v271, 0
    %834 = vmatprep.subr.mxu0 0.0
    %835 = vmatpush1.xpose.msra.mxu0 0.0
    %836 = vmatprep.subr.mxu0 0.0
    %837 = vmatpush1.xpose.msra.mxu0 0.0
    %838 = vmatprep.subr.mxu0 0.0
    %839 = vmatpush1.xpose.msra.mxu0 0.0
    %840 = vmatprep.subr.mxu0 0.0
    %841 = vmatpush1.xpose.msra.mxu0 0.0
    %842 = vmatprep.subr.mxu0 0.0
    %843 = vmatpush1.xpose.msra.mxu0 0.0
    %844 = vmatprep.subr.mxu0 0.0
    %845 = vmatpush1.xpose.msra.mxu0 0.0
    %846 = vmatprep.subr.mxu0 0.0
    %847 = vmatpush1.xpose.msra.mxu0 0.0
    %848 = vmatprep.subr.mxu0 0.0
    %849 = vmatpush1.xpose.msra.mxu0 0.0
    %850 = vmatprep.subr.mxu0 0.0
    %851 = vmatpush1.xpose.msra.mxu0 0.0
    %852 = vmatprep.subr.mxu0 0.0
    %853 = vmatpush1.xpose.msra.mxu0 0.0
    %854 = vmatprep.subr.mxu0 0.0
    %855 = vmatpush1.xpose.msra.mxu0 0.0
    %856 = vmatprep.subr.mxu0 0.0
    %857 = vmatpush1.xpose.msra.mxu0 0.0
    %858 = vmatprep.subr.mxu0 0.0
    %859 = vmatpush1.xpose.msra.mxu0 0.0
    %860 = vmatprep.subr.mxu0 0.0
    %861 = vmatpush1.xpose.msra.mxu0 0.0
    %862 = vmatprep.subr.mxu0 0.0
    %863 = vmatpush1.xpose.msra.mxu0 %v832
    %864 = vmatprep.subr.mxu0 0.0
    %865 = vmatpush1.xpose.msra.mxu0 %v829
    %866 = vmatprep.subr.mxu0 0.0
    %867 = vmatpush2.xpose.msra.mxu0 0.0
    %868 = vmatprep.subr.mxu0 0.0
    %869 = vmatpush2.xpose.msra.mxu0 0.0
    %870 = vmatprep.subr.mxu0 0.0
    %871 = vmatpush2.xpose.msra.mxu0 0.0
    %872 = vmatprep.subr.mxu0 0.0
    %873 = vmatpush2.xpose.msra.mxu0 0.0
    %874 = vmatprep.subr.mxu0 0.0
    %875 = vmatpush2.xpose.msra.mxu0 0.0
    %876 = vmatprep.subr.mxu0 0.0
    %877 = vmatpush2.xpose.msra.mxu0 0.0
    %878 = vmatprep.subr.mxu0 0.0
    %879 = vmatpush2.xpose.msra.mxu0 0.0
    %880 = vmatprep.subr.mxu0 0.0
    %881 = vmatpush2.xpose.msra.mxu0 0.0
    %882 = vmatprep.subr.mxu0 0.0
    %883 = vmatpush2.xpose.msra.mxu0 0.0
    %884 = vmatprep.subr.mxu0 0.0
    %885 = vmatpush2.xpose.msra.mxu0 0.0
    %886 = vmatprep.subr.mxu0 0.0
    %887 = vmatpush2.xpose.msra.mxu0 0.0
    %888 = vmatprep.subr.mxu0 0.0
    %889 = vmatpush2.xpose.msra.mxu0 0.0
    %890 = vmatprep.subr.mxu0 0.0
    %891 = vmatpush2.xpose.msra.mxu0 0.0
    %892 = vmatprep.subr.mxu0 0.0
    %893 = vmatpush2.xpose.msra.mxu0 0.0
    %894 = vmatprep.subr.mxu0 0.0
    %895 = vmatpush2.xpose.msra.mxu0 0.0
    %896 = vmatprep.subr.mxu0 0.0
    %897 = vmatpush2.xpose.msra.mxu0 0.0
    %898 = vmatprep.mubr.f32.mxu0 0.0
    %899 = vmatmul.mubr.f32.gmra.mxu0 %v829
    %v900 = vpop.f32.mrf.mxu0
    %v901 = vadd.f32 0.0, %v900
    %v902 = vpop.f32.mrf.mxu0
    %903 = vmatprep.mubr.f32.mxu0 0.0
    %904 = vmatmul.mubr.f32.gmra.mxu0 %v832
    %v905 = vpop.f32.mrf.mxu0
    %v906 = vadd.f32 0.0, %v905
    %v907 = vpop.f32.mrf.mxu0
    %908 = vdwg.mxu0
    %v910 = vsel %vm665, %v341, 0
    %v913 = vsel %vm665, %v346, 0
    %915 = vmatprep.subr.mxu0 0.0
    %916 = vmatpush1.xpose.msra.mxu0 0.0
    %917 = vmatprep.subr.mxu0 0.0
    %918 = vmatpush1.xpose.msra.mxu0 0.0
    %919 = vmatprep.subr.mxu0 0.0
    %920 = vmatpush1.xpose.msra.mxu0 0.0
    %921 = vmatprep.subr.mxu0 0.0
    %922 = vmatpush1.xpose.msra.mxu0 0.0
    %923 = vmatprep.subr.mxu0 0.0
    %924 = vmatpush1.xpose.msra.mxu0 0.0
    %925 = vmatprep.subr.mxu0 0.0
    %926 = vmatpush1.xpose.msra.mxu0 0.0
    %927 = vmatprep.subr.mxu0 0.0
    %928 = vmatpush1.xpose.msra.mxu0 0.0
    %929 = vmatprep.subr.mxu0 0.0
    %930 = vmatpush1.xpose.msra.mxu0 0.0
    %931 = vmatprep.subr.mxu0 0.0
    %932 = vmatpush1.xpose.msra.mxu0 0.0
    %933 = vmatprep.subr.mxu0 0.0
    %934 = vmatpush1.xpose.msra.mxu0 0.0
    %935 = vmatprep.subr.mxu0 0.0
    %936 = vmatpush1.xpose.msra.mxu0 0.0
    %937 = vmatprep.subr.mxu0 0.0
    %938 = vmatpush1.xpose.msra.mxu0 0.0
    %939 = vmatprep.subr.mxu0 0.0
    %940 = vmatpush1.xpose.msra.mxu0 0.0
    %941 = vmatprep.subr.mxu0 0.0
    %942 = vmatpush1.xpose.msra.mxu0 0.0
    %943 = vmatprep.subr.mxu0 0.0
    %944 = vmatpush1.xpose.msra.mxu0 %v913
    %945 = vmatprep.subr.mxu0 0.0
    %946 = vmatpush1.xpose.msra.mxu0 %v910
    %947 = vmatprep.subr.mxu0 0.0
    %948 = vmatpush2.xpose.msra.mxu0 0.0
    %949 = vmatprep.subr.mxu0 0.0
    %950 = vmatpush2.xpose.msra.mxu0 0.0
    %951 = vmatprep.subr.mxu0 0.0
    %952 = vmatpush2.xpose.msra.mxu0 0.0
    %953 = vmatprep.subr.mxu0 0.0
    %954 = vmatpush2.xpose.msra.mxu0 0.0
    %955 = vmatprep.subr.mxu0 0.0
    %956 = vmatpush2.xpose.msra.mxu0 0.0
    %957 = vmatprep.subr.mxu0 0.0
    %958 = vmatpush2.xpose.msra.mxu0 0.0
    %959 = vmatprep.subr.mxu0 0.0
    %960 = vmatpush2.xpose.msra.mxu0 0.0
    %961 = vmatprep.subr.mxu0 0.0
    %962 = vmatpush2.xpose.msra.mxu0 0.0
    %963 = vmatprep.subr.mxu0 0.0
    %964 = vmatpush2.xpose.msra.mxu0 0.0
    %965 = vmatprep.subr.mxu0 0.0
    %966 = vmatpush2.xpose.msra.mxu0 0.0
    %967 = vmatprep.subr.mxu0 0.0
    %968 = vmatpush2.xpose.msra.mxu0 0.0
    %969 = vmatprep.subr.mxu0 0.0
    %970 = vmatpush2.xpose.msra.mxu0 0.0
    %971 = vmatprep.subr.mxu0 0.0
    %972 = vmatpush2.xpose.msra.mxu0 0.0
    %973 = vmatprep.subr.mxu0 0.0
    %974 = vmatpush2.xpose.msra.mxu0 0.0
    %975 = vmatprep.subr.mxu0 0.0
    %976 = vmatpush2.xpose.msra.mxu0 0.0
    %977 = vmatprep.subr.mxu0 0.0
    %978 = vmatpush2.xpose.msra.mxu0 0.0
    %979 = vmatprep.mubr.f32.mxu0 0.0
    %980 = vmatmul.mubr.f32.gmra.mxu0 %v910
    %v981 = vpop.f32.mrf.mxu0
    %v982 = vadd.f32 0.0, %v981
    %v983 = vpop.f32.mrf.mxu0
    %984 = vmatprep.mubr.f32.mxu0 0.0
    %985 = vmatmul.mubr.f32.gmra.mxu0 %v913
    %v986 = vpop.f32.mrf.mxu0
    %v987 = vadd.f32 0.0, %v986
    %v988 = vpop.f32.mrf.mxu0
    %989 = vdwg.mxu0
    %v990 = vmul.f32 %v739, 0.17677669
    %v991 = vmul.f32 %v744, 0.17677669
    %v992 = vmul.f32 %v820, 0.17677669
    %v993 = vmul.f32 %v825, 0.17677669
    %v994 = vmul.f32 %v901, 0.17677669
    %v995 = vmul.f32 %v906, 0.17677669
    %v996 = vmul.f32 %v982, 0.17677669
    %v997 = vmul.f32 %v987, 0.17677669
    %vm998 = vcmask 130048
    %v999 = vsel %vm998, %v990, -inf
    %v1000 = vsel %vm998, %v992, -inf
    %v1001 = vsel %vm998, %v994, -inf
    %v1002 = vmax.f32 %v999, %v1001
    %v1003 = vsel %vm998, %v996, -inf
    %v1004 = vmax.f32 %v1000, %v1003
    %v1005 = vmax.f32 %v1002, %v1004
    %v1006 = vsel %vm998, %v991, -inf
    %v1007 = vsel %vm998, %v993, -inf
    %v1008 = vsel %vm998, %v995, -inf
    %v1009 = vmax.f32 %v1006, %v1008
    %v1010 = vsel %vm998, %v997, -inf
    %v1011 = vmax.f32 %v1007, %v1010
    %v1012 = vmax.f32 %v1009, %v1011
    %v1013 = vsub.f32 %v990, %v1005
    %v1014 = vsub.f32 %v991, %v1012
    %v1015 = vsub.f32 %v992, %v1005
    %v1016 = vsub.f32 %v993, %v1012
    %v1017 = vsub.f32 %v994, %v1005
    %v1018 = vsub.f32 %v995, %v1012
    %v1019 = vsub.f32 %v996, %v1005
    %v1020 = vsub.f32 %v997, %v1012
    %v1021 = vmul.f32 %v1013, 1.442695
    %v1022 = vpow.pop %v1021
    %v1023 = vmul.f32 %v1014, 1.442695
    %v1024 = vpow.pop %v1023
    %v1025 = vmul.f32 %v1015, 1.442695
    %v1026 = vpow.pop %v1025
    %v1027 = vmul.f32 %v1016, 1.442695
    %v1028 = vpow.pop %v1027
    %v1029 = vmul.f32 %v1017, 1.442695
    %v1030 = vpow.pop %v1029
    %v1031 = vmul.f32 %v1018, 1.442695
    %v1032 = vpow.pop %v1031
    %v1033 = vmul.f32 %v1019, 1.442695
    %v1034 = vpow.pop %v1033
    %v1035 = vmul.f32 %v1020, 1.442695
    %v1036 = vpow.pop %v1035
    %v1037 = vsel %vm998, %v1022, 0.0
    %v1038 = vsel %vm998, %v1026, 0.0
    %v1039 = vadd.f32 %v1037, %v1038
    %v1040 = vsel %vm998, %v1030, 0.0
    %v1041 = vadd.f32 %v1039, %v1040
    %v1042 = vsel %vm998, %v1034, 0.0
    %v1043 = vadd.f32 %v1041, %v1042
    %v1044 = vsel %vm998, %v1024, 0.0
    %v1045 = vsel %vm998, %v1028, 0.0
    %v1046 = vadd.f32 %v1044, %v1045
    %v1047 = vsel %vm998, %v1032, 0.0
    %v1048 = vadd.f32 %v1046, %v1047
    %v1049 = vsel %vm998, %v1036, 0.0
    %v1050 = vadd.f32 %v1048, %v1049
    %v1051 = vrcp.pop %v1043
    %v1052 = vrcp.pop %v1050
    %v1053 = vmul.f32 %v1022, %v1051
    %v1054 = vmul.f32 %v1024, %v1052
    %v1055 = vmul.f32 %v1026, %v1051
    %v1056 = vmul.f32 %v1028, %v1052
    %v1057 = vmul.f32 %v1030, %v1051
    %v1058 = vmul.f32 %v1032, %v1052
    %v1059 = vmul.f32 %v1034, %v1051
    %v1060 = vmul.f32 %v1036, %v1052
    %v1061 = vld [vmem:[%s5] sm:$0xff]
    %v1062 = vld [vmem:[%s5 + $0x8] sm:$0xff]
    %v1063 = vmul.f32 %v1053, %v1061
    %v1064 = vmul.f32 %v1054, %v1062
    %v1065 = vmul.f32 %v1055, %v1061
    %v1066 = vmul.f32 %v1056, %v1062
    %v1067 = vmul.f32 %v1057, %v1061
    %v1068 = vmul.f32 %v1058, %v1062
    %v1069 = vmul.f32 %v1059, %v1061
    %v1070 = vmul.f32 %v1060, %v1062
    %v1072 = vsel %vm998, %v1063, 0
    %v1075 = vsel %vm998, %v1064, 0
    %1077 = vmatprep.subr.mxu0 0.0
    %1078 = vmatpush1.msra.mxu0 0.0
    %1079 = vmatprep.subr.mxu0 0.0
    %1080 = vmatpush1.msra.mxu0 0.0
    %1081 = vmatprep.subr.mxu0 0.0
    %1082 = vmatpush1.msra.mxu0 0.0
    %1083 = vmatprep.subr.mxu0 0.0
    %1084 = vmatpush1.msra.mxu0 0.0
    %1085 = vmatprep.subr.mxu0 0.0
    %1086 = vmatpush1.msra.mxu0 0.0
    %1087 = vmatprep.subr.mxu0 0.0
    %1088 = vmatpush1.msra.mxu0 0.0
    %1089 = vmatprep.subr.mxu0 0.0
    %1090 = vmatpush1.msra.mxu0 0.0
    %1091 = vmatprep.subr.mxu0 0.0
    %1092 = vmatpush1.msra.mxu0 0.0
    %1093 = vmatprep.subr.mxu0 0.0
    %1094 = vmatpush1.msra.mxu0 0.0
    %1095 = vmatprep.subr.mxu0 0.0
    %1096 = vmatpush1.msra.mxu0 0.0
    %1097 = vmatprep.subr.mxu0 0.0
    %1098 = vmatpush1.msra.mxu0 0.0
    %1099 = vmatprep.subr.mxu0 0.0
    %1100 = vmatpush1.msra.mxu0 0.0
    %1101 = vmatprep.subr.mxu0 0.0
    %1102 = vmatpush1.msra.mxu0 0.0
    %1103 = vmatprep.subr.mxu0 0.0
    %1104 = vmatpush1.msra.mxu0 0.0
    %1105 = vmatprep.subr.mxu0 0.0
    %1106 = vmatpush1.msra.mxu0 %v437
    %1107 = vmatprep.subr.mxu0 0.0
    %1108 = vmatpush1.msra.mxu0 %v432
    %1109 = vmatprep.subr.mxu0 0.0
    %1110 = vmatpush2.msra.mxu0 0.0
    %1111 = vmatprep.subr.mxu0 0.0
    %1112 = vmatpush2.msra.mxu0 0.0
    %1113 = vmatprep.subr.mxu0 0.0
    %1114 = vmatpush2.msra.mxu0 0.0
    %1115 = vmatprep.subr.mxu0 0.0
    %1116 = vmatpush2.msra.mxu0 0.0
    %1117 = vmatprep.subr.mxu0 0.0
    %1118 = vmatpush2.msra.mxu0 0.0
    %1119 = vmatprep.subr.mxu0 0.0
    %1120 = vmatpush2.msra.mxu0 0.0
    %1121 = vmatprep.subr.mxu0 0.0
    %1122 = vmatpush2.msra.mxu0 0.0
    %1123 = vmatprep.subr.mxu0 0.0
    %1124 = vmatpush2.msra.mxu0 0.0
    %1125 = vmatprep.subr.mxu0 0.0
    %1126 = vmatpush2.msra.mxu0 0.0
    %1127 = vmatprep.subr.mxu0 0.0
    %1128 = vmatpush2.msra.mxu0 0.0
    %1129 = vmatprep.subr.mxu0 0.0
    %1130 = vmatpush2.msra.mxu0 0.0
    %1131 = vmatprep.subr.mxu0 0.0
    %1132 = vmatpush2.msra.mxu0 0.0
    %1133 = vmatprep.subr.mxu0 0.0
    %1134 = vmatpush2.msra.mxu0 0.0
    %1135 = vmatprep.subr.mxu0 0.0
    %1136 = vmatpush2.msra.mxu0 0.0
    %1137 = vmatprep.subr.mxu0 0.0
    %1138 = vmatpush2.msra.mxu0 0.0
    %1139 = vmatprep.subr.mxu0 0.0
    %1140 = vmatpush2.msra.mxu0 0.0
    %1141 = vmatprep.mubr.f32.mxu0 0.0
    %1142 = vmatmul.mubr.f32.gmra.mxu0 %v1072
    %v1143 = vpop.f32.mrf.mxu0
    %v1144 = vadd.f32 0.0, %v1143
    %v1145 = vpop.f32.mrf.mxu0
    %1146 = vmatprep.mubr.f32.mxu0 0.0
    %1147 = vmatmul.mubr.f32.gmra.mxu0 %v1075
    %v1148 = vpop.f32.mrf.mxu0
    %v1149 = vadd.f32 0.0, %v1148
    %v1150 = vpop.f32.mrf.mxu0
    %1151 = vdwg.mxu0
    %v1153 = vsel %vm998, %v1065, 0
    %v1156 = vsel %vm998, %v1066, 0
    %1158 = vmatprep.subr.mxu0 0.0
    %1159 = vmatpush1.msra.mxu0 0.0
    %1160 = vmatprep.subr.mxu0 0.0
    %1161 = vmatpush1.msra.mxu0 0.0
    %1162 = vmatprep.subr.mxu0 0.0
    %1163 = vmatpush1.msra.mxu0 0.0
    %1164 = vmatprep.subr.mxu0 0.0
    %1165 = vmatpush1.msra.mxu0 0.0
    %1166 = vmatprep.subr.mxu0 0.0
    %1167 = vmatpush1.msra.mxu0 0.0
    %1168 = vmatprep.subr.mxu0 0.0
    %1169 = vmatpush1.msra.mxu0 0.0
    %1170 = vmatprep.subr.mxu0 0.0
    %1171 = vmatpush1.msra.mxu0 0.0
    %1172 = vmatprep.subr.mxu0 0.0
    %1173 = vmatpush1.msra.mxu0 0.0
    %1174 = vmatprep.subr.mxu0 0.0
    %1175 = vmatpush1.msra.mxu0 0.0
    %1176 = vmatprep.subr.mxu0 0.0
    %1177 = vmatpush1.msra.mxu0 0.0
    %1178 = vmatprep.subr.mxu0 0.0
    %1179 = vmatpush1.msra.mxu0 0.0
    %1180 = vmatprep.subr.mxu0 0.0
    %1181 = vmatpush1.msra.mxu0 0.0
    %1182 = vmatprep.subr.mxu0 0.0
    %1183 = vmatpush1.msra.mxu0 0.0
    %1184 = vmatprep.subr.mxu0 0.0
    %1185 = vmatpush1.msra.mxu0 0.0
    %1186 = vmatprep.subr.mxu0 0.0
    %1187 = vmatpush1.msra.mxu0 %v512
    %1188 = vmatprep.subr.mxu0 0.0
    %1189 = vmatpush1.msra.mxu0 %v507
    %1190 = vmatprep.subr.mxu0 0.0
    %1191 = vmatpush2.msra.mxu0 0.0
    %1192 = vmatprep.subr.mxu0 0.0
    %1193 = vmatpush2.msra.mxu0 0.0
    %1194 = vmatprep.subr.mxu0 0.0
    %1195 = vmatpush2.msra.mxu0 0.0
    %1196 = vmatprep.subr.mxu0 0.0
    %1197 = vmatpush2.msra.mxu0 0.0
    %1198 = vmatprep.subr.mxu0 0.0
    %1199 = vmatpush2.msra.mxu0 0.0
    %1200 = vmatprep.subr.mxu0 0.0
    %1201 = vmatpush2.msra.mxu0 0.0
    %1202 = vmatprep.subr.mxu0 0.0
    %1203 = vmatpush2.msra.mxu0 0.0
    %1204 = vmatprep.subr.mxu0 0.0
    %1205 = vmatpush2.msra.mxu0 0.0
    %1206 = vmatprep.subr.mxu0 0.0
    %1207 = vmatpush2.msra.mxu0 0.0
    %1208 = vmatprep.subr.mxu0 0.0
    %1209 = vmatpush2.msra.mxu0 0.0
    %1210 = vmatprep.subr.mxu0 0.0
    %1211 = vmatpush2.msra.mxu0 0.0
    %1212 = vmatprep.subr.mxu0 0.0
    %1213 = vmatpush2.msra.mxu0 0.0
    %1214 = vmatprep.subr.mxu0 0.0
    %1215 = vmatpush2.msra.mxu0 0.0
    %1216 = vmatprep.subr.mxu0 0.0
    %1217 = vmatpush2.msra.mxu0 0.0
    %1218 = vmatprep.subr.mxu0 0.0
    %1219 = vmatpush2.msra.mxu0 0.0
    %1220 = vmatprep.subr.mxu0 0.0
    %1221 = vmatpush2.msra.mxu0 0.0
    %1222 = vmatprep.mubr.f32.mxu0 0.0
    %1223 = vmatmul.mubr.f32.gmra.mxu0 %v1153
    %v1224 = vpop.f32.mrf.mxu0
    %v1225 = vadd.f32 0.0, %v1224
    %v1226 = vpop.f32.mrf.mxu0
    %1227 = vmatprep.mubr.f32.mxu0 0.0
    %1228 = vmatmul.mubr.f32.gmra.mxu0 %v1156
    %v1229 = vpop.f32.mrf.mxu0
    %v1230 = vadd.f32 0.0, %v1229
    %v1231 = vpop.f32.mrf.mxu0
    %1232 = vdwg.mxu0
    %v1234 = vsel %vm998, %v1067, 0
    %v1237 = vsel %vm998, %v1068, 0
    %1239 = vmatprep.subr.mxu0 0.0
    %1240 = vmatpush1.msra.mxu0 0.0
    %1241 = vmatprep.subr.mxu0 0.0
    %1242 = vmatpush1.msra.mxu0 0.0
    %1243 = vmatprep.subr.mxu0 0.0
    %1244 = vmatpush1.msra.mxu0 0.0
    %1245 = vmatprep.subr.mxu0 0.0
    %1246 = vmatpush1.msra.mxu0 0.0
    %1247 = vmatprep.subr.mxu0 0.0
    %1248 = vmatpush1.msra.mxu0 0.0
    %1249 = vmatprep.subr.mxu0 0.0
    %1250 = vmatpush1.msra.mxu0 0.0
    %1251 = vmatprep.subr.mxu0 0.0
    %1252 = vmatpush1.msra.mxu0 0.0
    %1253 = vmatprep.subr.mxu0 0.0
    %1254 = vmatpush1.msra.mxu0 0.0
    %1255 = vmatprep.subr.mxu0 0.0
    %1256 = vmatpush1.msra.mxu0 0.0
    %1257 = vmatprep.subr.mxu0 0.0
    %1258 = vmatpush1.msra.mxu0 0.0
    %1259 = vmatprep.subr.mxu0 0.0
    %1260 = vmatpush1.msra.mxu0 0.0
    %1261 = vmatprep.subr.mxu0 0.0
    %1262 = vmatpush1.msra.mxu0 0.0
    %1263 = vmatprep.subr.mxu0 0.0
    %1264 = vmatpush1.msra.mxu0 0.0
    %1265 = vmatprep.subr.mxu0 0.0
    %1266 = vmatpush1.msra.mxu0 0.0
    %1267 = vmatprep.subr.mxu0 0.0
    %1268 = vmatpush1.msra.mxu0 %v587
    %1269 = vmatprep.subr.mxu0 0.0
    %1270 = vmatpush1.msra.mxu0 %v582
    %1271 = vmatprep.subr.mxu0 0.0
    %1272 = vmatpush2.msra.mxu0 0.0
    %1273 = vmatprep.subr.mxu0 0.0
    %1274 = vmatpush2.msra.mxu0 0.0
    %1275 = vmatprep.subr.mxu0 0.0
    %1276 = vmatpush2.msra.mxu0 0.0
    %1277 = vmatprep.subr.mxu0 0.0
    %1278 = vmatpush2.msra.mxu0 0.0
    %1279 = vmatprep.subr.mxu0 0.0
    %1280 = vmatpush2.msra.mxu0 0.0
    %1281 = vmatprep.subr.mxu0 0.0
    %1282 = vmatpush2.msra.mxu0 0.0
    %1283 = vmatprep.subr.mxu0 0.0
    %1284 = vmatpush2.msra.mxu0 0.0
    %1285 = vmatprep.subr.mxu0 0.0
    %1286 = vmatpush2.msra.mxu0 0.0
    %1287 = vmatprep.subr.mxu0 0.0
    %1288 = vmatpush2.msra.mxu0 0.0
    %1289 = vmatprep.subr.mxu0 0.0
    %1290 = vmatpush2.msra.mxu0 0.0
    %1291 = vmatprep.subr.mxu0 0.0
    %1292 = vmatpush2.msra.mxu0 0.0
    %1293 = vmatprep.subr.mxu0 0.0
    %1294 = vmatpush2.msra.mxu0 0.0
    %1295 = vmatprep.subr.mxu0 0.0
    %1296 = vmatpush2.msra.mxu0 0.0
    %1297 = vmatprep.subr.mxu0 0.0
    %1298 = vmatpush2.msra.mxu0 0.0
    %1299 = vmatprep.subr.mxu0 0.0
    %1300 = vmatpush2.msra.mxu0 0.0
    %1301 = vmatprep.subr.mxu0 0.0
    %1302 = vmatpush2.msra.mxu0 0.0
    %1303 = vmatprep.mubr.f32.mxu0 0.0
    %1304 = vmatmul.mubr.f32.gmra.mxu0 %v1234
    %v1305 = vpop.f32.mrf.mxu0
    %v1306 = vadd.f32 0.0, %v1305
    %v1307 = vpop.f32.mrf.mxu0
    %1308 = vmatprep.mubr.f32.mxu0 0.0
    %1309 = vmatmul.mubr.f32.gmra.mxu0 %v1237
    %v1310 = vpop.f32.mrf.mxu0
    %v1311 = vadd.f32 0.0, %v1310
    %v1312 = vpop.f32.mrf.mxu0
    %1313 = vdwg.mxu0
    %v1315 = vsel %vm998, %v1069, 0
    %v1318 = vsel %vm998, %v1070, 0
    %1320 = vmatprep.subr.mxu0 0.0
    %1321 = vmatpush1.msra.mxu0 0.0
    %1322 = vmatprep.subr.mxu0 0.0
    %1323 = vmatpush1.msra.mxu0 0.0
    %1324 = vmatprep.subr.mxu0 0.0
    %1325 = vmatpush1.msra.mxu0 0.0
    %1326 = vmatprep.subr.mxu0 0.0
    %1327 = vmatpush1.msra.mxu0 0.0
    %1328 = vmatprep.subr.mxu0 0.0
    %1329 = vmatpush1.msra.mxu0 0.0
    %1330 = vmatprep.subr.mxu0 0.0
    %1331 = vmatpush1.msra.mxu0 0.0
    %1332 = vmatprep.subr.mxu0 0.0
    %1333 = vmatpush1.msra.mxu0 0.0
    %1334 = vmatprep.subr.mxu0 0.0
    %1335 = vmatpush1.msra.mxu0 0.0
    %1336 = vmatprep.subr.mxu0 0.0
    %1337 = vmatpush1.msra.mxu0 0.0
    %1338 = vmatprep.subr.mxu0 0.0
    %1339 = vmatpush1.msra.mxu0 0.0
    %1340 = vmatprep.subr.mxu0 0.0
    %1341 = vmatpush1.msra.mxu0 0.0
    %1342 = vmatprep.subr.mxu0 0.0
    %1343 = vmatpush1.msra.mxu0 0.0
    %1344 = vmatprep.subr.mxu0 0.0
    %1345 = vmatpush1.msra.mxu0 0.0
    %1346 = vmatprep.subr.mxu0 0.0
    %1347 = vmatpush1.msra.mxu0 0.0
    %1348 = vmatprep.subr.mxu0 0.0
    %1349 = vmatpush1.msra.mxu0 %v662
    %1350 = vmatprep.subr.mxu0 0.0
    %1351 = vmatpush1.msra.mxu0 %v657
    %1352 = vmatprep.subr.mxu0 0.0
    %1353 = vmatpush2.msra.mxu0 0.0
    %1354 = vmatprep.subr.mxu0 0.0
    %1355 = vmatpush2.msra.mxu0 0.0
    %1356 = vmatprep.subr.mxu0 0.0
    %1357 = vmatpush2.msra.mxu0 0.0
    %1358 = vmatprep.subr.mxu0 0.0
    %1359 = vmatpush2.msra.mxu0 0.0
    %1360 = vmatprep.subr.mxu0 0.0
    %1361 = vmatpush2.msra.mxu0 0.0
    %1362 = vmatprep.subr.mxu0 0.0
    %1363 = vmatpush2.msra.mxu0 0.0
    %1364 = vmatprep.subr.mxu0 0.0
    %1365 = vmatpush2.msra.mxu0 0.0
    %1366 = vmatprep.subr.mxu0 0.0
    %1367 = vmatpush2.msra.mxu0 0.0
    %1368 = vmatprep.subr.mxu0 0.0
    %1369 = vmatpush2.msra.mxu0 0.0
    %1370 = vmatprep.subr.mxu0 0.0
    %1371 = vmatpush2.msra.mxu0 0.0
    %1372 = vmatprep.subr.mxu0 0.0
    %1373 = vmatpush2.msra.mxu0 0.0
    %1374 = vmatprep.subr.mxu0 0.0
    %1375 = vmatpush2.msra.mxu0 0.0
    %1376 = vmatprep.subr.mxu0 0.0
    %1377 = vmatpush2.msra.mxu0 0.0
    %1378 = vmatprep.subr.mxu0 0.0
    %1379 = vmatpush2.msra.mxu0 0.0
    %1380 = vmatprep.subr.mxu0 0.0
    %1381 = vmatpush2.msra.mxu0 0.0
    %1382 = vmatprep.subr.mxu0 0.0
    %1383 = vmatpush2.msra.mxu0 0.0
    %1384 = vmatprep.mubr.f32.mxu0 0.0
    %1385 = vmatmul.mubr.f32.gmra.mxu0 %v1315
    %v1386 = vpop.f32.mrf.mxu0
    %v1387 = vadd.f32 0.0, %v1386
    %v1388 = vpop.f32.mrf.mxu0
    %1389 = vmatprep.mubr.f32.mxu0 0.0
    %1390 = vmatmul.mubr.f32.gmra.mxu0 %v1318
    %v1391 = vpop.f32.mrf.mxu0
    %v1392 = vadd.f32 0.0, %v1391
    %v1393 = vpop.f32.mrf.mxu0
    %1394 = vdwg.mxu0
    %v1395 = vld [vmem:[%s3] sm:$0xff]
    %v1396 = vld [vmem:[%s3 + $0x8] sm:$0xff]
    %v1397 = vld [vmem:[%s3 + $0x10] sm:$0xff]
    %v1398 = vld [vmem:[%s3 + $0x18] sm:$0xff]
    %v1400 = vsel %vm665, %v1144, 0
    %v1403 = vsel %vm665, %v1149, 0
    %1405 = vmatprep.subr.mxu0 0.0
    %1406 = vmatpush1.msra.mxu0 0.0
    %1407 = vmatprep.subr.mxu0 0.0
    %1408 = vmatpush1.msra.mxu0 0.0
    %1409 = vmatprep.subr.mxu0 0.0
    %1410 = vmatpush1.msra.mxu0 0.0
    %1411 = vmatprep.subr.mxu0 0.0
    %1412 = vmatpush1.msra.mxu0 0.0
    %1413 = vmatprep.subr.mxu0 0.0
    %1414 = vmatpush1.msra.mxu0 0.0
    %1415 = vmatprep.subr.mxu0 0.0
    %1416 = vmatpush1.msra.mxu0 0.0
    %1417 = vmatprep.subr.mxu0 0.0
    %1418 = vmatpush1.msra.mxu0 0.0
    %1419 = vmatprep.subr.mxu0 0.0
    %1420 = vmatpush1.msra.mxu0 0.0
    %1421 = vmatprep.subr.mxu0 0.0
    %1422 = vmatpush1.msra.mxu0 0.0
    %1423 = vmatprep.subr.mxu0 0.0
    %1424 = vmatpush1.msra.mxu0 0.0
    %1425 = vmatprep.subr.mxu0 0.0
    %1426 = vmatpush1.msra.mxu0 0.0
    %1427 = vmatprep.subr.mxu0 0.0
    %1428 = vmatpush1.msra.mxu0 0.0
    %1429 = vmatprep.subr.mxu0 0.0
    %1430 = vmatpush1.msra.mxu0 0.0
    %1431 = vmatprep.subr.mxu0 0.0
    %1432 = vmatpush1.msra.mxu0 0.0
    %1433 = vmatprep.subr.mxu0 0.0
    %1434 = vmatpush1.msra.mxu0 0.0
    %1435 = vmatprep.subr.mxu0 0.0
    %1436 = vmatpush1.msra.mxu0 %v1395
    %1437 = vmatprep.subr.mxu0 0.0
    %1438 = vmatpush2.msra.mxu0 0.0
    %1439 = vmatprep.subr.mxu0 0.0
    %1440 = vmatpush2.msra.mxu0 0.0
    %1441 = vmatprep.subr.mxu0 0.0
    %1442 = vmatpush2.msra.mxu0 0.0
    %1443 = vmatprep.subr.mxu0 0.0
    %1444 = vmatpush2.msra.mxu0 0.0
    %1445 = vmatprep.subr.mxu0 0.0
    %1446 = vmatpush2.msra.mxu0 0.0
    %1447 = vmatprep.subr.mxu0 0.0
    %1448 = vmatpush2.msra.mxu0 0.0
    %1449 = vmatprep.subr.mxu0 0.0
    %1450 = vmatpush2.msra.mxu0 0.0
    %1451 = vmatprep.subr.mxu0 0.0
    %1452 = vmatpush2.msra.mxu0 0.0
    %1453 = vmatprep.subr.mxu0 0.0
    %1454 = vmatpush2.msra.mxu0 0.0
    %1455 = vmatprep.subr.mxu0 0.0
    %1456 = vmatpush2.msra.mxu0 0.0
    %1457 = vmatprep.subr.mxu0 0.0
    %1458 = vmatpush2.msra.mxu0 0.0
    %1459 = vmatprep.subr.mxu0 0.0
    %1460 = vmatpush2.msra.mxu0 0.0
    %1461 = vmatprep.subr.mxu0 0.0
    %1462 = vmatpush2.msra.mxu0 0.0
    %1463 = vmatprep.subr.mxu0 0.0
    %1464 = vmatpush2.msra.mxu0 0.0
    %1465 = vmatprep.subr.mxu0 0.0
    %1466 = vmatpush2.msra.mxu0 0.0
    %1467 = vmatprep.subr.mxu0 0.0
    %1468 = vmatpush2.msra.mxu0 0.0
    %1469 = vmatprep.mubr.f32.mxu0 0.0
    %1470 = vmatmul.mubr.f32.gmra.mxu0 %v1400
    %v1471 = vpop.f32.mrf.mxu0
    %v1472 = vadd.f32 0.0, %v1471
    %v1473 = vpop.f32.mrf.mxu0
    %1474 = vmatprep.mubr.f32.mxu0 0.0
    %1475 = vmatmul.mubr.f32.gmra.mxu0 %v1403
    %v1476 = vpop.f32.mrf.mxu0
    %v1477 = vadd.f32 0.0, %v1476
    %v1478 = vpop.f32.mrf.mxu0
    %1479 = vdwg.mxu0
    %v1481 = vsel %vm665, %v1225, 0
    %v1484 = vsel %vm665, %v1230, 0
    %1486 = vmatprep.subr.mxu0 0.0
    %1487 = vmatpush1.msra.mxu0 0.0
    %1488 = vmatprep.subr.mxu0 0.0
    %1489 = vmatpush1.msra.mxu0 0.0
    %1490 = vmatprep.subr.mxu0 0.0
    %1491 = vmatpush1.msra.mxu0 0.0
    %1492 = vmatprep.subr.mxu0 0.0
    %1493 = vmatpush1.msra.mxu0 0.0
    %1494 = vmatprep.subr.mxu0 0.0
    %1495 = vmatpush1.msra.mxu0 0.0
    %1496 = vmatprep.subr.mxu0 0.0
    %1497 = vmatpush1.msra.mxu0 0.0
    %1498 = vmatprep.subr.mxu0 0.0
    %1499 = vmatpush1.msra.mxu0 0.0
    %1500 = vmatprep.subr.mxu0 0.0
    %1501 = vmatpush1.msra.mxu0 0.0
    %1502 = vmatprep.subr.mxu0 0.0
    %1503 = vmatpush1.msra.mxu0 0.0
    %1504 = vmatprep.subr.mxu0 0.0
    %1505 = vmatpush1.msra.mxu0 0.0
    %1506 = vmatprep.subr.mxu0 0.0
    %1507 = vmatpush1.msra.mxu0 0.0
    %1508 = vmatprep.subr.mxu0 0.0
    %1509 = vmatpush1.msra.mxu0 0.0
    %1510 = vmatprep.subr.mxu0 0.0
    %1511 = vmatpush1.msra.mxu0 0.0
    %1512 = vmatprep.subr.mxu0 0.0
    %1513 = vmatpush1.msra.mxu0 0.0
    %1514 = vmatprep.subr.mxu0 0.0
    %1515 = vmatpush1.msra.mxu0 0.0
    %1516 = vmatprep.subr.mxu0 0.0
    %1517 = vmatpush1.msra.mxu0 %v1396
    %1518 = vmatprep.subr.mxu0 0.0
    %1519 = vmatpush2.msra.mxu0 0.0
    %1520 = vmatprep.subr.mxu0 0.0
    %1521 = vmatpush2.msra.mxu0 0.0
    %1522 = vmatprep.subr.mxu0 0.0
    %1523 = vmatpush2.msra.mxu0 0.0
    %1524 = vmatprep.subr.mxu0 0.0
    %1525 = vmatpush2.msra.mxu0 0.0
    %1526 = vmatprep.subr.mxu0 0.0
    %1527 = vmatpush2.msra.mxu0 0.0
    %1528 = vmatprep.subr.mxu0 0.0
    %1529 = vmatpush2.msra.mxu0 0.0
    %1530 = vmatprep.subr.mxu0 0.0
    %1531 = vmatpush2.msra.mxu0 0.0
    %1532 = vmatprep.subr.mxu0 0.0
    %1533 = vmatpush2.msra.mxu0 0.0
    %1534 = vmatprep.subr.mxu0 0.0
    %1535 = vmatpush2.msra.mxu0 0.0
    %1536 = vmatprep.subr.mxu0 0.0
    %1537 = vmatpush2.msra.mxu0 0.0
    %1538 = vmatprep.subr.mxu0 0.0
    %1539 = vmatpush2.msra.mxu0 0.0
    %1540 = vmatprep.subr.mxu0 0.0
    %1541 = vmatpush2.msra.mxu0 0.0
    %1542 = vmatprep.subr.mxu0 0.0
    %1543 = vmatpush2.msra.mxu0 0.0
    %1544 = vmatprep.subr.mxu0 0.0
    %1545 = vmatpush2.msra.mxu0 0.0
    %1546 = vmatprep.subr.mxu0 0.0
    %1547 = vmatpush2.msra.mxu0 0.0
    %1548 = vmatprep.subr.mxu0 0.0
    %1549 = vmatpush2.msra.mxu0 0.0
    %1550 = vmatprep.mubr.f32.mxu0 0.0
    %1551 = vmatmul.mubr.f32.gmra.mxu0 %v1481
    %v1552 = vpop.f32.mrf.mxu0
    %v1553 = vadd.f32 0.0, %v1552
    %v1554 = vpop.f32.mrf.mxu0
    %1555 = vmatprep.mubr.f32.mxu0 0.0
    %1556 = vmatmul.mubr.f32.gmra.mxu0 %v1484
    %v1557 = vpop.f32.mrf.mxu0
    %v1558 = vadd.f32 0.0, %v1557
    %v1559 = vpop.f32.mrf.mxu0
    %1560 = vdwg.mxu0
    %v1562 = vsel %vm665, %v1306, 0
    %v1565 = vsel %vm665, %v1311, 0
    %1567 = vmatprep.subr.mxu0 0.0
    %1568 = vmatpush1.msra.mxu0 0.0
    %1569 = vmatprep.subr.mxu0 0.0
    %1570 = vmatpush1.msra.mxu0 0.0
    %1571 = vmatprep.subr.mxu0 0.0
    %1572 = vmatpush1.msra.mxu0 0.0
    %1573 = vmatprep.subr.mxu0 0.0
    %1574 = vmatpush1.msra.mxu0 0.0
    %1575 = vmatprep.subr.mxu0 0.0
    %1576 = vmatpush1.msra.mxu0 0.0
    %1577 = vmatprep.subr.mxu0 0.0
    %1578 = vmatpush1.msra.mxu0 0.0
    %1579 = vmatprep.subr.mxu0 0.0
    %1580 = vmatpush1.msra.mxu0 0.0
    %1581 = vmatprep.subr.mxu0 0.0
    %1582 = vmatpush1.msra.mxu0 0.0
    %1583 = vmatprep.subr.mxu0 0.0
    %1584 = vmatpush1.msra.mxu0 0.0
    %1585 = vmatprep.subr.mxu0 0.0
    %1586 = vmatpush1.msra.mxu0 0.0
    %1587 = vmatprep.subr.mxu0 0.0
    %1588 = vmatpush1.msra.mxu0 0.0
    %1589 = vmatprep.subr.mxu0 0.0
    %1590 = vmatpush1.msra.mxu0 0.0
    %1591 = vmatprep.subr.mxu0 0.0
    %1592 = vmatpush1.msra.mxu0 0.0
    %1593 = vmatprep.subr.mxu0 0.0
    %1594 = vmatpush1.msra.mxu0 0.0
    %1595 = vmatprep.subr.mxu0 0.0
    %1596 = vmatpush1.msra.mxu0 0.0
    %1597 = vmatprep.subr.mxu0 0.0
    %1598 = vmatpush1.msra.mxu0 %v1397
    %1599 = vmatprep.subr.mxu0 0.0
    %1600 = vmatpush2.msra.mxu0 0.0
    %1601 = vmatprep.subr.mxu0 0.0
    %1602 = vmatpush2.msra.mxu0 0.0
    %1603 = vmatprep.subr.mxu0 0.0
    %1604 = vmatpush2.msra.mxu0 0.0
    %1605 = vmatprep.subr.mxu0 0.0
    %1606 = vmatpush2.msra.mxu0 0.0
    %1607 = vmatprep.subr.mxu0 0.0
    %1608 = vmatpush2.msra.mxu0 0.0
    %1609 = vmatprep.subr.mxu0 0.0
    %1610 = vmatpush2.msra.mxu0 0.0
    %1611 = vmatprep.subr.mxu0 0.0
    %1612 = vmatpush2.msra.mxu0 0.0
    %1613 = vmatprep.subr.mxu0 0.0
    %1614 = vmatpush2.msra.mxu0 0.0
    %1615 = vmatprep.subr.mxu0 0.0
    %1616 = vmatpush2.msra.mxu0 0.0
    %1617 = vmatprep.subr.mxu0 0.0
    %1618 = vmatpush2.msra.mxu0 0.0
    %1619 = vmatprep.subr.mxu0 0.0
    %1620 = vmatpush2.msra.mxu0 0.0
    %1621 = vmatprep.subr.mxu0 0.0
    %1622 = vmatpush2.msra.mxu0 0.0
    %1623 = vmatprep.subr.mxu0 0.0
    %1624 = vmatpush2.msra.mxu0 0.0
    %1625 = vmatprep.subr.mxu0 0.0
    %1626 = vmatpush2.msra.mxu0 0.0
    %1627 = vmatprep.subr.mxu0 0.0
    %1628 = vmatpush2.msra.mxu0 0.0
    %1629 = vmatprep.subr.mxu0 0.0
    %1630 = vmatpush2.msra.mxu0 0.0
    %1631 = vmatprep.mubr.f32.mxu0 0.0
    %1632 = vmatmul.mubr.f32.gmra.mxu0 %v1562
    %v1633 = vpop.f32.mrf.mxu0
    %v1634 = vadd.f32 0.0, %v1633
    %v1635 = vpop.f32.mrf.mxu0
    %1636 = vmatprep.mubr.f32.mxu0 0.0
    %1637 = vmatmul.mubr.f32.gmra.mxu0 %v1565
    %v1638 = vpop.f32.mrf.mxu0
    %v1639 = vadd.f32 0.0, %v1638
    %v1640 = vpop.f32.mrf.mxu0
    %1641 = vdwg.mxu0
    %v1643 = vsel %vm665, %v1387, 0
    %v1646 = vsel %vm665, %v1392, 0
    %1648 = vmatprep.subr.mxu0 0.0
    %1649 = vmatpush1.msra.mxu0 0.0
    %1650 = vmatprep.subr.mxu0 0.0
    %1651 = vmatpush1.msra.mxu0 0.0
    %1652 = vmatprep.subr.mxu0 0.0
    %1653 = vmatpush1.msra.mxu0 0.0
    %1654 = vmatprep.subr.mxu0 0.0
    %1655 = vmatpush1.msra.mxu0 0.0
    %1656 = vmatprep.subr.mxu0 0.0
    %1657 = vmatpush1.msra.mxu0 0.0
    %1658 = vmatprep.subr.mxu0 0.0
    %1659 = vmatpush1.msra.mxu0 0.0
    %1660 = vmatprep.subr.mxu0 0.0
    %1661 = vmatpush1.msra.mxu0 0.0
    %1662 = vmatprep.subr.mxu0 0.0
    %1663 = vmatpush1.msra.mxu0 0.0
    %1664 = vmatprep.subr.mxu0 0.0
    %1665 = vmatpush1.msra.mxu0 0.0
    %1666 = vmatprep.subr.mxu0 0.0
    %1667 = vmatpush1.msra.mxu0 0.0
    %1668 = vmatprep.subr.mxu0 0.0
    %1669 = vmatpush1.msra.mxu0 0.0
    %1670 = vmatprep.subr.mxu0 0.0
    %1671 = vmatpush1.msra.mxu0 0.0
    %1672 = vmatprep.subr.mxu0 0.0
    %1673 = vmatpush1.msra.mxu0 0.0
    %1674 = vmatprep.subr.mxu0 0.0
    %1675 = vmatpush1.msra.mxu0 0.0
    %1676 = vmatprep.subr.mxu0 0.0
    %1677 = vmatpush1.msra.mxu0 0.0
    %1678 = vmatprep.subr.mxu0 0.0
    %1679 = vmatpush1.msra.mxu0 %v1398
    %1680 = vmatprep.subr.mxu0 0.0
    %1681 = vmatpush2.msra.mxu0 0.0
    %1682 = vmatprep.subr.mxu0 0.0
    %1683 = vmatpush2.msra.mxu0 0.0
    %1684 = vmatprep.subr.mxu0 0.0
    %1685 = vmatpush2.msra.mxu0 0.0
    %1686 = vmatprep.subr.mxu0 0.0
    %1687 = vmatpush2.msra.mxu0 0.0
    %1688 = vmatprep.subr.mxu0 0.0
    %1689 = vmatpush2.msra.mxu0 0.0
    %1690 = vmatprep.subr.mxu0 0.0
    %1691 = vmatpush2.msra.mxu0 0.0
    %1692 = vmatprep.subr.mxu0 0.0
    %1693 = vmatpush2.msra.mxu0 0.0
    %1694 = vmatprep.subr.mxu0 0.0
    %1695 = vmatpush2.msra.mxu0 0.0
    %1696 = vmatprep.subr.mxu0 0.0
    %1697 = vmatpush2.msra.mxu0 0.0
    %1698 = vmatprep.subr.mxu0 0.0
    %1699 = vmatpush2.msra.mxu0 0.0
    %1700 = vmatprep.subr.mxu0 0.0
    %1701 = vmatpush2.msra.mxu0 0.0
    %1702 = vmatprep.subr.mxu0 0.0
    %1703 = vmatpush2.msra.mxu0 0.0
    %1704 = vmatprep.subr.mxu0 0.0
    %1705 = vmatpush2.msra.mxu0 0.0
    %1706 = vmatprep.subr.mxu0 0.0
    %1707 = vmatpush2.msra.mxu0 0.0
    %1708 = vmatprep.subr.mxu0 0.0
    %1709 = vmatpush2.msra.mxu0 0.0
    %1710 = vmatprep.subr.mxu0 0.0
    %1711 = vmatpush2.msra.mxu0 0.0
    %1712 = vmatprep.mubr.f32.mxu0 0.0
    %1713 = vmatmul.mubr.f32.gmra.mxu0 %v1643
    %v1714 = vpop.f32.mrf.mxu0
    %v1715 = vadd.f32 0.0, %v1714
    %v1716 = vpop.f32.mrf.mxu0
    %1717 = vmatprep.mubr.f32.mxu0 0.0
    %1718 = vmatmul.mubr.f32.gmra.mxu0 %v1646
    %v1719 = vpop.f32.mrf.mxu0
    %v1720 = vadd.f32 0.0, %v1719
    %v1721 = vpop.f32.mrf.mxu0
    %1722 = vdwg.mxu0
    %v1723 = vsel %vm42, %v1472, 0.0
    %v1724 = vsel %vm42, %v1553, 0.0
    %v1725 = vadd.f32 %v1723, %v1724
    %v1726 = vsel %vm42, %v1634, 0.0
    %v1727 = vadd.f32 %v1725, %v1726
    %v1728 = vsel %vm42, %v1715, 0.0
    %v1729 = vadd.f32 %v1727, %v1728
    %v1730 = vsel %vm42, %v1477, 0.0
    %v1731 = vsel %vm42, %v1558, 0.0
    %v1732 = vadd.f32 %v1730, %v1731
    %v1733 = vsel %vm42, %v1639, 0.0
    %v1734 = vadd.f32 %v1732, %v1733
    %v1735 = vsel %vm42, %v1720, 0.0
    %v1736 = vadd.f32 %v1734, %v1735
    %v1737 = vld [vmem:[%s4] sm:$0x1]
    %v1739 = vlaneseq
    %v1740 = vshrl.u32 %v1739, 7
    %v1741 = vsub.s32 0, %v1740
    %v1742 = vrot.slane %v1737, %v1741
    %v1744 = vadd.f32 %v1729, %v1742
    %v1745 = vadd.f32 %v1736, %v1742
    %1746 = vst.msk [vmem:[#allocation2] sm:$0xff] %vm42, %v1744
    %1747 = vst.msk [vmem:[#allocation2 + $0x8] sm:$0xff] %vm42, %v1745
    // Predicated region
    $region26: #{tpu_custom_call.1} parent=1 // pred_check
      _
    $region27: #{tpu_custom_call.1} parent=1 // pred_check_branch
      %1749 = sbr.rel (0) target = $region29
    $region28: #{tpu_custom_call.1} parent=1 // pred_region
      %s1751 = ssub.s32 256, 256
      %1752 = vsyncadd [#allocation3], %s1751
      %s1753 = sshll.u32 [#allocation2], 4
      %s1754 = int_to_ptr.vmem [resolvable:$true] %s1753
      %1759 = dma.vmem_to_hbm [thread:$0]  %s1754, 256, %s6, [#allocation3], 128, 128, 8
    $region29: #{tpu_custom_call.1} parent=1 // pred_fallthru
      _
    // Predicated region
    $region30: #{tpu_custom_call.1} parent=1 // pred_check
      _
    $region31: #{tpu_custom_call.1} parent=1 // pred_check_branch
      %1761 = sbr.rel (0) target = $region33
    $region32: #{tpu_custom_call.1} parent=1 // pred_region
      %1762 = dma.done [#allocation3], 256
    $region33: #{tpu_custom_call.1} parent=1 // pred_fallthru
      _
    %1763 = vsyncpa [#allocation3], 1

</llo_original>
